<compile_context>
chip_gen: v7x
topology: tpu7x:2x2x1
jax: 0.10.0
libtpu: 0.0.40
codegen_flags: <defaults>
</compile_context>

<pallas_src>
import jax
import jax.numpy as jnp
from jax import lax
from jax.experimental import pallas as pl
from jax.experimental.pallas import tpu as pltpu


BB = 8  # MCTS leaves evaluated per grid step


# ----------------------------------------------------------------------------
# Pallas kernel: BB leaves per grid step.
#
#   obs_proj rows:  [ obs_emb@W1_node_0 (v) ; ... ; obs_emb@W1_node_{nd1-1} (v) ;
#                     W1_time + b1        (time_horizon+1) ]          -> (nd1*v+T1, h)
#   act_p1        :  W1_act @ act_emb.T + b1_act[:, None]             -> (h, v)
# ----------------------------------------------------------------------------
def _policy_kernel(n_act_ref, node_t_ref,        # SMEM (Bp,), (Bp, nd1+1) int32
                   act_flat_ref,                 # VMEM (1, 1, BB*A) int32
                   obs_proj_ref,                 # VMEM (nd1*v + T1, h) f32
                   obs_w2_ref,                   # VMEM (h, h) f32  (= W2_obs.T)
                   obs_b2_ref,                   # VMEM (1, h) f32
                   act_p1_ref,                   # VMEM (h, v) f32
                   act_w2_ref,                   # VMEM (h, h) f32  (= W2_act)
                   act_b2_ref,                   # VMEM (h, 1) f32
                   out_ref,                      # VMEM (BB, A) f32
                   hb_ref):                      # scratch VMEM (BB, h) f32
    f32 = jnp.float32
    bb_n, a_max = out_ref.shape
    h, v = act_p1_ref.shape
    nd1 = node_t_ref.shape[1] - 1                # node slots (defenders + attacker)
    pid = pl.program_id(0)

    # ---- obs branch layer 1: SMEM-indexed row gathers of folded W1 rows -----
    for bb in range(bb_n):
        g = pid * bb_n + bb                      # global leaf index (SMEM read)
        s = obs_proj_ref[pl.ds(node_t_ref[g, 0], 1), :]
        for k in range(1, nd1):
            s = s + obs_proj_ref[pl.ds(k * v + node_t_ref[g, k], 1), :]
        # time-one-hot contribution (obs_f1 bias already folded into these rows)
        s = s + obs_proj_ref[pl.ds(nd1 * v + node_t_ref[g, nd1], 1), :]
        hb_ref[bb:bb + 1, :] = s                 # (1, h)

    # ---- obs branch layer 2: ONE (BB, h) @ (h, h) matmul ---------------------
    h_obs = jnp.dot(jnp.maximum(hb_ref[...], 0.0), obs_w2_ref[...],
                    preferred_element_type=f32) + obs_b2_ref[...]      # (BB, h)

    # ---- action branch, lane-dense (action axis in lanes) --------------------
    act_ids = act_flat_ref[0]                                          # (1, BB*A)
    rsel = lax.broadcasted_iota(jnp.int32, (v, bb_n * a_max), 0)
    onehot_t = (rsel == act_ids).astype(f32)                           # (v, BB*A)
    # layer 1 (embedding + act_f1 + bias, all folded into act_p1 columns)
    h1a = jnp.dot(act_p1_ref[...], onehot_t,
                  preferred_element_type=f32)                          # (h, BB*A)
    # layer 2
    h2a = jnp.dot(act_w2_ref[...], jnp.maximum(h1a, 0.0),
                  preferred_element_type=f32) + act_b2_ref[...]        # (h, BB*A)

    # ---- logits: block-diagonal strips of one batched matmul -----------------
    full = jnp.dot(h_obs, h2a, preferred_element_type=f32)             # (BB, BB*A)
    lane = lax.broadcasted_iota(jnp.int32, (1, a_max), 1)
    rows = []
    for bb in range(bb_n):
        g = pid * bb_n + bb
        row = full[bb:bb + 1, bb * a_max:(bb + 1) * a_max]             # (1, A)
        # NOTE: if n_act == 0 (padded leaves) the row degenerates to uniform;
        # such rows are sliced off by the wrapper.
        rows.append(jnp.where(lane < n_act_ref[g], row, -1e30))
    logits = jnp.concatenate(rows, axis=0)                             # (BB, A)

    m = jnp.max(logits, axis=-1, keepdims=True)
    ex = jnp.exp(logits - m)
    out_ref[...] = ex / jnp.sum(ex, axis=-1, keepdims=True)            # exact norm


# ----------------------------------------------------------------------------
# Batched runner (jit-ed).  BB leaves per grid step, batch padded to BB.
# ----------------------------------------------------------------------------
def _pad_rows(x, rows):
    pad = rows - x.shape[0]
    if pad == 0:
        return x
    return jnp.concatenate(
        [x, jnp.zeros((pad,) + x.shape[1:], x.dtype)], axis=0)


@jax.jit
def policy_forward_batch(packed, n_act, node_t_idx, act_idx):
    b = n_act.shape[0]
    a_max = act_idx.shape[1]
    h = packed["obs_w2"].shape[0]
    nb = -(-b // BB)                      # grid length
    bp = nb * BB

    n_act_p = _pad_rows(n_act.astype(jnp.int32), bp)            # (bp,)
    node_t_p = _pad_rows(node_t_idx.astype(jnp.int32), bp)      # (bp, nd1+1)
    act_p = _pad_rows(act_idx.astype(jnp.int32), bp)            # (bp, A)
    act_p = act_p.reshape(nb, 1, BB * a_max)                    # lane-flat per step

    const = lambda i, n, t: (0, 0)        # resident weights
    grid_spec = pltpu.PrefetchScalarGridSpec(
        num_scalar_prefetch=2,            # n_act, node_t -> SMEM
        grid=(nb,),
        in_specs=[
            pl.BlockSpec((1, 1, BB * a_max), lambda i, n, t: (i, 0, 0)),
            pl.BlockSpec(packed["obs_proj"].shape, const),
            pl.BlockSpec(packed["obs_w2"].shape, const),
            pl.BlockSpec(packed["obs_b2"].shape, const),
            pl.BlockSpec(packed["act_p1"].shape, const),
            pl.BlockSpec(packed["act_w2"].shape, const),
            pl.BlockSpec(packed["act_b2"].shape, const),
        ],
        out_specs=pl.BlockSpec((BB, a_max), lambda i, n, t: (i, 0)),
        scratch_shapes=[pltpu.VMEM((BB, h), jnp.float32)],
    )
    probs = pl.pallas_call(
        _policy_kernel,
        grid_spec=grid_spec,
        out_shape=jax.ShapeDtypeStruct((bp, a_max), jnp.float32),
        compiler_params=pltpu.CompilerParams(
            dimension_semantics=("parallel",)),
    )(n_act_p, node_t_p, act_p,
      packed["obs_proj"], packed["obs_w2"], packed["obs_b2"],
      packed["act_p1"], packed["act_w2"], packed["act_b2"])
    return probs[:b]


# ----------------------------------------------------------------------------
# Parameter construction (PyTorch conventions) + one-time folding/packing.
# ----------------------------------------------------------------------------
def init_params(key, num_nodes, embedding_dim, hidden_dim,
                num_defender, time_horizon):
    d_obs = (num_defender + 1) * embedding_dim + time_horizon + 1
    shapes = {
        "obsn_emb": (num_nodes + 1, embedding_dim),
        "actn_emb": (num_nodes + 1, embedding_dim),
        "obs_f1_w": (hidden_dim, d_obs),
        "obs_f1_b": (hidden_dim,),
        "obs_f2_w": (hidden_dim, hidden_dim),
        "obs_f2_b": (hidden_dim,),
        "act_f1_w": (hidden_dim, embedding_dim),
        "act_f1_b": (hidden_dim,),
        "act_f2_w": (hidden_dim, hidden_dim),
        "act_f2_b": (hidden_dim,),
    }
    keys = jax.random.split(key, len(shapes))
    params = {}
    for k, (name, shape) in zip(keys, sorted(shapes.items())):
        params[name] = 0.1 * jax.random.normal(k, shape, dtype=jnp.float32)
    return params


def pack_params(raw, num_defender, time_horizon):
    """Exact reparametrization done ONCE:
       * obs embedding folded through obs_f1's per-node blocks; obs_f1 bias
         folded into the time rows  -> row-gatherable (nd1*v + T+1, h) table.
       * act embedding folded through act_f1 (+ its bias) -> (h, v) operand
         for the lane-dense one-hot matmul."""
    f32 = jnp.float32
    obs_tab = raw["obsn_emb"].astype(f32)                 # (v, e)
    act_tab = raw["actn_emb"].astype(f32)                 # (v, e)
    w1o, b1o = raw["obs_f1_w"].astype(f32), raw["obs_f1_b"].astype(f32)
    w2o, b2o = raw["obs_f2_w"].astype(f32), raw["obs_f2_b"].astype(f32)
    w1a, b1a = raw["act_f1_w"].astype(f32), raw["act_f1_b"].astype(f32)
    w2a, b2a = raw["act_f2_w"].astype(f32), raw["act_f2_b"].astype(f32)

    v, e = obs_tab.shape
    nd1 = num_defender + 1
    t1 = time_horizon + 1

    node_blocks = [obs_tab @ w1o[:, k * e:(k + 1) * e].T for k in range(nd1)]
    time_rows = w1o[:, nd1 * e:nd1 * e + t1].T + b1o[None, :]   # b1 folded here
    return {
        "obs_proj": jnp.concatenate(node_blocks + [time_rows], axis=0),
        "obs_w2": w2o.T,                  # (h, h): right-multiply rows
        "obs_b2": b2o[None, :],           # (1, h)
        "act_p1": w1a @ act_tab.T + b1a[:, None],   # (h, v), bias folded
        "act_w2": w2a,                    # (h, h): left-multiply columns
        "act_b2": b2a[:, None],           # (h, 1)
    }


# ----------------------------------------------------------------------------
# Single-observation forward (mirrors policy_net.forward(obs, legal_act)).
# Host-side obs parsing / history truncation stays in Python glue.
# ----------------------------------------------------------------------------
def policy_forward(packed, attacker_his, defender_position, legal_act,
                   time_horizon, max_actions=128):
    his = (attacker_his[-(time_horizon + 1):]
           if len(attacker_his) > time_horizon + 1 else attacker_his)
    node_t = list(defender_position) + [attacker_his[-1], len(his) - 1]
    acts = list(legal_act)
    padded = acts + [0] * (max_actions - len(acts))
    probs = policy_forward_batch(
        packed,
        jnp.asarray([len(acts)], jnp.int32),
        jnp.asarray([node_t], jnp.int32),
        jnp.asarray([padded], jnp.int32))
    return probs[0, :len(acts)]


# Pure-JAX reference (PyTorch math, unpacked params) for correctness checking.
def policy_forward_ref(raw, attacker_his, defender_position, legal_act,
                       time_horizon):
    node_ids = list(defender_position) + [attacker_his[-1]]
    obs = jnp.take(raw["obsn_emb"],
                   jnp.asarray(node_ids, jnp.int32), axis=0).reshape(-1)
    his = (attacker_his[-(time_horizon + 1):]
           if len(attacker_his) > time_horizon + 1 else attacker_his)
    t = jax.nn.one_hot(len(his) - 1, time_horizon + 1, dtype=jnp.float32)
    obs = jnp.concatenate([obs, t])
    obs = raw["obs_f1_w"] @ obs + raw["obs_f1_b"]
    obs = raw["obs_f2_w"] @ jnp.maximum(obs, 0.0) + raw["obs_f2_b"]
    act = jnp.take(raw["actn_emb"],
                   jnp.asarray(legal_act, jnp.int32), axis=0)
    act = act @ raw["act_f1_w"].T + raw["act_f1_b"]
    act = jnp.maximum(act, 0.0) @ raw["act_f2_w"].T + raw["act_f2_b"]
    return jax.nn.softmax(act @ obs, axis=-1)


if __name__ == "__main__":
    # Small synthetic game configuration.
    num_nodes = 15          # embedding vocab = 16 (id 0 = padding)
    embedding_dim = 8
    hidden_dim = 32
    num_defender = 3
    time_horizon = 7        # -> 8 time classes
    A_MAX = 128             # lane-dense, fixed-width action axis

    key = jax.random.PRNGKey(0)
    pkey, skey = jax.random.split(key)
    raw = init_params(pkey, num_nodes, embedding_dim, hidden_dim,
                      num_defender, time_horizon)
    packed = pack_params(raw, num_defender, time_horizon)

    # B=12 MCTS-style leaf evaluations: with BB=8 this gives a 2-step grid
    # (exercises megacore-parallel split on v7x) AND the batch-padding path.
    B = 12
    rng = jax.random.split(skey, 3 * B)
    scenarios = []
    for i in range(B):
        dpos = [int(x) for x in
                jax.random.randint(rng[3 * i], (num_defender,), 1, num_nodes + 1)]
        hlen = 3 + (i % 8)                       # some exceed horizon+1 -> truncation
        ahis = [int(x) for x in
                jax.random.randint(rng[3 * i + 1], (hlen,), 1, num_nodes + 1)]
        nact = 3 + (i % 6)
        lact = [int(x) for x in
                jax.random.randint(rng[3 * i + 2], (nact,), 1, num_nodes + 1)]
        scenarios.append((ahis, dpos, lact))

    node_t_rows, act_rows, n_act_rows = [], [], []
    for ahis, dpos, lact in scenarios:
        his = (ahis[-(time_horizon + 1):]
               if len(ahis) > time_horizon + 1 else ahis)
        node_t_rows.append(list(dpos) + [ahis[-1], len(his) - 1])
        act_rows.append(list(lact) + [0] * (A_MAX - len(lact)))
        n_act_rows.append(len(lact))
    node_t_idx = jnp.asarray(node_t_rows, jnp.int32)       # (B, 5)
    act_idx = jnp.asarray(act_rows, jnp.int32)              # (B, 128)
    n_act = jnp.asarray(n_act_rows, jnp.int32)               # (B,)

    probs = jax.block_until_ready(
        policy_forward_batch(packed, n_act, node_t_idx, act_idx))

    for i, (ahis, dpos, lact) in enumerate(scenarios):
        ref = policy_forward_ref(raw, ahis, dpos, lact, time_horizon)
        got = probs[i, :len(lact)]
        assert jnp.allclose(jnp.sum(got), 1.0, atol=1e-3), i
        assert jnp.allclose(got, ref, rtol=1e-2, atol=3e-3), (i, got, ref)
        # padded action slots must carry (essentially) zero probability mass
        assert float(jnp.sum(probs[i, len(lact):])) < 1e-6

    # Single-observation path (mirrors policy_net.forward), B=1 padded to BB.
    ahis, dpos, lact = scenarios[0]
    p1 = jax.block_until_ready(
        policy_forward(packed, ahis, dpos, lact, time_horizon, max_actions=A_MAX))
    ref1 = policy_forward_ref(raw, ahis, dpos, lact, time_horizon)
    assert p1.shape == (len(lact),)
    assert jnp.allclose(p1, ref1, rtol=1e-2, atol=3e-3), (p1, ref1)

    print("KERNEL_OK")
</pallas_src>

<mosaic_0001>
module attributes {stable_mosaic.version = 11 : i64} {
  func.func @_policy_kernel(%arg0: i32, %arg1: memref<16xi32, #tpu.memory_space<smem>>, %arg2: memref<16x5xi32, #tpu.memory_space<smem>>, %arg3: memref<1x1x1024xi32, #tpu.memory_space<vmem>>, %arg4: memref<72x32xf32, #tpu.memory_space<vmem>>, %arg5: memref<32x32xf32, #tpu.memory_space<vmem>>, %arg6: memref<1x32xf32, #tpu.memory_space<vmem>>, %arg7: memref<32x16xf32, #tpu.memory_space<vmem>>, %arg8: memref<32x32xf32, #tpu.memory_space<vmem>>, %arg9: memref<32x1xf32, #tpu.memory_space<vmem>>, %arg10: memref<8x128xf32, #tpu.memory_space<vmem>>, %arg11: memref<8x32xf32, #tpu.memory_space<vmem>>) attributes {dimension_semantics = [#tpu.dimension_semantics<parallel>], iteration_bounds = array<i64: 2>, scalar_prefetch = 2 : i64, scratch_operands = 1 : i64, tpu.core_type = #tpu.core_type<tc>, window_params = [{transform_indices = @transform_0, window_bounds = array<i64: 1, 1, 1024>}, {pipeline_mode = #tpu.pipeline_mode<synchronous>, transform_indices = @transform_1, window_bounds = array<i64: 72, 32>}, {pipeline_mode = #tpu.pipeline_mode<synchronous>, transform_indices = @transform_2, window_bounds = array<i64: 32, 32>}, {pipeline_mode = #tpu.pipeline_mode<synchronous>, transform_indices = @transform_3, window_bounds = array<i64: 1, 32>}, {pipeline_mode = #tpu.pipeline_mode<synchronous>, transform_indices = @transform_4, window_bounds = array<i64: 32, 16>}, {pipeline_mode = #tpu.pipeline_mode<synchronous>, transform_indices = @transform_5, window_bounds = array<i64: 32, 32>}, {pipeline_mode = #tpu.pipeline_mode<synchronous>, transform_indices = @transform_6, window_bounds = array<i64: 32, 1>}, {transform_indices = @transform_7, window_bounds = array<i64: 8, 128>}]} {
    %c8_i32 = arith.constant 8 : i32
    %0 = arith.muli %arg0, %c8_i32 : i32
    %c0_i32 = arith.constant 0 : i32
    %1 = arith.addi %0, %c0_i32 : i32
    %2 = arith.index_cast %1 : i32 to index
    %c0 = arith.constant 0 : index
    %3 = memref.load %arg2[%2, %c0] : memref<16x5xi32, #tpu.memory_space<smem>>
    %4 = arith.index_cast %3 : i32 to index
    %c0_0 = arith.constant 0 : index
    %5 = vector.load %arg4[%4, %c0_0] : memref<72x32xf32, #tpu.memory_space<vmem>>, vector<1x32xf32>
    %6 = arith.index_cast %1 : i32 to index
    %c1 = arith.constant 1 : index
    %7 = memref.load %arg2[%6, %c1] : memref<16x5xi32, #tpu.memory_space<smem>>
    %c16_i32 = arith.constant 16 : i32
    %8 = arith.addi %c16_i32, %7 : i32
    %9 = arith.index_cast %8 : i32 to index
    %c0_1 = arith.constant 0 : index
    %10 = vector.load %arg4[%9, %c0_1] : memref<72x32xf32, #tpu.memory_space<vmem>>, vector<1x32xf32>
    %11 = arith.addf %5, %10 : vector<1x32xf32>
    %12 = arith.index_cast %1 : i32 to index
    %c2 = arith.constant 2 : index
    %13 = memref.load %arg2[%12, %c2] : memref<16x5xi32, #tpu.memory_space<smem>>
    %c32_i32 = arith.constant 32 : i32
    %14 = arith.addi %c32_i32, %13 : i32
    %15 = arith.index_cast %14 : i32 to index
    %c0_2 = arith.constant 0 : index
    %16 = vector.load %arg4[%15, %c0_2] : memref<72x32xf32, #tpu.memory_space<vmem>>, vector<1x32xf32>
    %17 = arith.addf %11, %16 : vector<1x32xf32>
    %18 = arith.index_cast %1 : i32 to index
    %c3 = arith.constant 3 : index
    %19 = memref.load %arg2[%18, %c3] : memref<16x5xi32, #tpu.memory_space<smem>>
    %c48_i32 = arith.constant 48 : i32
    %20 = arith.addi %c48_i32, %19 : i32
    %21 = arith.index_cast %20 : i32 to index
    %c0_3 = arith.constant 0 : index
    %22 = vector.load %arg4[%21, %c0_3] : memref<72x32xf32, #tpu.memory_space<vmem>>, vector<1x32xf32>
    %23 = arith.addf %17, %22 : vector<1x32xf32>
    %24 = arith.index_cast %1 : i32 to index
    %c4 = arith.constant 4 : index
    %25 = memref.load %arg2[%24, %c4] : memref<16x5xi32, #tpu.memory_space<smem>>
    %c64_i32 = arith.constant 64 : i32
    %26 = arith.addi %c64_i32, %25 : i32
    %27 = arith.index_cast %26 : i32 to index
    %c0_4 = arith.constant 0 : index
    %28 = vector.load %arg4[%27, %c0_4] : memref<72x32xf32, #tpu.memory_space<vmem>>, vector<1x32xf32>
    %29 = arith.addf %23, %28 : vector<1x32xf32>
    %c0_5 = arith.constant 0 : index
    %c0_6 = arith.constant 0 : index
    %30 = vector.load %arg11[%c0_5, %c0_6] : memref<8x32xf32, #tpu.memory_space<vmem>>, vector<1x32xf32>
    tpu.vector_store %arg11[%c0_5, %c0_6], %29 {strides = array<i32>} : memref<8x32xf32, #tpu.memory_space<vmem>>, vector<1x32xf32>,
    %c8_i32_7 = arith.constant 8 : i32
    %31 = arith.muli %arg0, %c8_i32_7 : i32
    %c1_i32 = arith.constant 1 : i32
    %32 = arith.addi %31, %c1_i32 : i32
    %33 = arith.index_cast %32 : i32 to index
    %c0_8 = arith.constant 0 : index
    %34 = memref.load %arg2[%33, %c0_8] : memref<16x5xi32, #tpu.memory_space<smem>>
    %35 = arith.index_cast %34 : i32 to index
    %c0_9 = arith.constant 0 : index
    %36 = vector.load %arg4[%35, %c0_9] : memref<72x32xf32, #tpu.memory_space<vmem>>, vector<1x32xf32>
    %37 = arith.index_cast %32 : i32 to index
    %c1_10 = arith.constant 1 : index
    %38 = memref.load %arg2[%37, %c1_10] : memref<16x5xi32, #tpu.memory_space<smem>>
    %c16_i32_11 = arith.constant 16 : i32
    %39 = arith.addi %c16_i32_11, %38 : i32
    %40 = arith.index_cast %39 : i32 to index
    %c0_12 = arith.constant 0 : index
    %41 = vector.load %arg4[%40, %c0_12] : memref<72x32xf32, #tpu.memory_space<vmem>>, vector<1x32xf32>
    %42 = arith.addf %36, %41 : vector<1x32xf32>
    %43 = arith.index_cast %32 : i32 to index
    %c2_13 = arith.constant 2 : index
    %44 = memref.load %arg2[%43, %c2_13] : memref<16x5xi32, #tpu.memory_space<smem>>
    %c32_i32_14 = arith.constant 32 : i32
    %45 = arith.addi %c32_i32_14, %44 : i32
    %46 = arith.index_cast %45 : i32 to index
    %c0_15 = arith.constant 0 : index
    %47 = vector.load %arg4[%46, %c0_15] : memref<72x32xf32, #tpu.memory_space<vmem>>, vector<1x32xf32>
    %48 = arith.addf %42, %47 : vector<1x32xf32>
    %49 = arith.index_cast %32 : i32 to index
    %c3_16 = arith.constant 3 : index
    %50 = memref.load %arg2[%49, %c3_16] : memref<16x5xi32, #tpu.memory_space<smem>>
    %c48_i32_17 = arith.constant 48 : i32
    %51 = arith.addi %c48_i32_17, %50 : i32
    %52 = arith.index_cast %51 : i32 to index
    %c0_18 = arith.constant 0 : index
    %53 = vector.load %arg4[%52, %c0_18] : memref<72x32xf32, #tpu.memory_space<vmem>>, vector<1x32xf32>
    %54 = arith.addf %48, %53 : vector<1x32xf32>
    %55 = arith.index_cast %32 : i32 to index
    %c4_19 = arith.constant 4 : index
    %56 = memref.load %arg2[%55, %c4_19] : memref<16x5xi32, #tpu.memory_space<smem>>
    %c64_i32_20 = arith.constant 64 : i32
    %57 = arith.addi %c64_i32_20, %56 : i32
    %58 = arith.index_cast %57 : i32 to index
    %c0_21 = arith.constant 0 : index
    %59 = vector.load %arg4[%58, %c0_21] : memref<72x32xf32, #tpu.memory_space<vmem>>, vector<1x32xf32>
    %60 = arith.addf %54, %59 : vector<1x32xf32>
    %c1_22 = arith.constant 1 : index
    %c0_23 = arith.constant 0 : index
    %61 = vector.load %arg11[%c1_22, %c0_23] : memref<8x32xf32, #tpu.memory_space<vmem>>, vector<1x32xf32>
    tpu.vector_store %arg11[%c1_22, %c0_23], %60 {strides = array<i32>} : memref<8x32xf32, #tpu.memory_space<vmem>>, vector<1x32xf32>,
    %c8_i32_24 = arith.constant 8 : i32
    %62 = arith.muli %arg0, %c8_i32_24 : i32
    %c2_i32 = arith.constant 2 : i32
    %63 = arith.addi %62, %c2_i32 : i32
    %64 = arith.index_cast %63 : i32 to index
    %c0_25 = arith.constant 0 : index
    %65 = memref.load %arg2[%64, %c0_25] : memref<16x5xi32, #tpu.memory_space<smem>>
    %66 = arith.index_cast %65 : i32 to index
    %c0_26 = arith.constant 0 : index
    %67 = vector.load %arg4[%66, %c0_26] : memref<72x32xf32, #tpu.memory_space<vmem>>, vector<1x32xf32>
    %68 = arith.index_cast %63 : i32 to index
    %c1_27 = arith.constant 1 : index
    %69 = memref.load %arg2[%68, %c1_27] : memref<16x5xi32, #tpu.memory_space<smem>>
    %c16_i32_28 = arith.constant 16 : i32
    %70 = arith.addi %c16_i32_28, %69 : i32
    %71 = arith.index_cast %70 : i32 to index
    %c0_29 = arith.constant 0 : index
    %72 = vector.load %arg4[%71, %c0_29] : memref<72x32xf32, #tpu.memory_space<vmem>>, vector<1x32xf32>
    %73 = arith.addf %67, %72 : vector<1x32xf32>
    %74 = arith.index_cast %63 : i32 to index
    %c2_30 = arith.constant 2 : index
    %75 = memref.load %arg2[%74, %c2_30] : memref<16x5xi32, #tpu.memory_space<smem>>
    %c32_i32_31 = arith.constant 32 : i32
    %76 = arith.addi %c32_i32_31, %75 : i32
    %77 = arith.index_cast %76 : i32 to index
    %c0_32 = arith.constant 0 : index
    %78 = vector.load %arg4[%77, %c0_32] : memref<72x32xf32, #tpu.memory_space<vmem>>, vector<1x32xf32>
    %79 = arith.addf %73, %78 : vector<1x32xf32>
    %80 = arith.index_cast %63 : i32 to index
    %c3_33 = arith.constant 3 : index
    %81 = memref.load %arg2[%80, %c3_33] : memref<16x5xi32, #tpu.memory_space<smem>>
    %c48_i32_34 = arith.constant 48 : i32
    %82 = arith.addi %c48_i32_34, %81 : i32
    %83 = arith.index_cast %82 : i32 to index
    %c0_35 = arith.constant 0 : index
    %84 = vector.load %arg4[%83, %c0_35] : memref<72x32xf32, #tpu.memory_space<vmem>>, vector<1x32xf32>
    %85 = arith.addf %79, %84 : vector<1x32xf32>
    %86 = arith.index_cast %63 : i32 to index
    %c4_36 = arith.constant 4 : index
    %87 = memref.load %arg2[%86, %c4_36] : memref<16x5xi32, #tpu.memory_space<smem>>
    %c64_i32_37 = arith.constant 64 : i32
    %88 = arith.addi %c64_i32_37, %87 : i32
    %89 = arith.index_cast %88 : i32 to index
    %c0_38 = arith.constant 0 : index
    %90 = vector.load %arg4[%89, %c0_38] : memref<72x32xf32, #tpu.memory_space<vmem>>, vector<1x32xf32>
    %91 = arith.addf %85, %90 : vector<1x32xf32>
    %c2_39 = arith.constant 2 : index
    %c0_40 = arith.constant 0 : index
    %92 = vector.load %arg11[%c2_39, %c0_40] : memref<8x32xf32, #tpu.memory_space<vmem>>, vector<1x32xf32>
    tpu.vector_store %arg11[%c2_39, %c0_40], %91 {strides = array<i32>} : memref<8x32xf32, #tpu.memory_space<vmem>>, vector<1x32xf32>,
    %c8_i32_41 = arith.constant 8 : i32
    %93 = arith.muli %arg0, %c8_i32_41 : i32
    %c3_i32 = arith.constant 3 : i32
    %94 = arith.addi %93, %c3_i32 : i32
    %95 = arith.index_cast %94 : i32 to index
    %c0_42 = arith.constant 0 : index
    %96 = memref.load %arg2[%95, %c0_42] : memref<16x5xi32, #tpu.memory_space<smem>>
    %97 = arith.index_cast %96 : i32 to index
    %c0_43 = arith.constant 0 : index
    %98 = vector.load %arg4[%97, %c0_43] : memref<72x32xf32, #tpu.memory_space<vmem>>, vector<1x32xf32>
    %99 = arith.index_cast %94 : i32 to index
    %c1_44 = arith.constant 1 : index
    %100 = memref.load %arg2[%99, %c1_44] : memref<16x5xi32, #tpu.memory_space<smem>>
    %c16_i32_45 = arith.constant 16 : i32
    %101 = arith.addi %c16_i32_45, %100 : i32
    %102 = arith.index_cast %101 : i32 to index
    %c0_46 = arith.constant 0 : index
    %103 = vector.load %arg4[%102, %c0_46] : memref<72x32xf32, #tpu.memory_space<vmem>>, vector<1x32xf32>
    %104 = arith.addf %98, %103 : vector<1x32xf32>
    %105 = arith.index_cast %94 : i32 to index
    %c2_47 = arith.constant 2 : index
    %106 = memref.load %arg2[%105, %c2_47] : memref<16x5xi32, #tpu.memory_space<smem>>
    %c32_i32_48 = arith.constant 32 : i32
    %107 = arith.addi %c32_i32_48, %106 : i32
    %108 = arith.index_cast %107 : i32 to index
    %c0_49 = arith.constant 0 : index
    %109 = vector.load %arg4[%108, %c0_49] : memref<72x32xf32, #tpu.memory_space<vmem>>, vector<1x32xf32>
    %110 = arith.addf %104, %109 : vector<1x32xf32>
    %111 = arith.index_cast %94 : i32 to index
    %c3_50 = arith.constant 3 : index
    %112 = memref.load %arg2[%111, %c3_50] : memref<16x5xi32, #tpu.memory_space<smem>>
    %c48_i32_51 = arith.constant 48 : i32
    %113 = arith.addi %c48_i32_51, %112 : i32
    %114 = arith.index_cast %113 : i32 to index
    %c0_52 = arith.constant 0 : index
    %115 = vector.load %arg4[%114, %c0_52] : memref<72x32xf32, #tpu.memory_space<vmem>>, vector<1x32xf32>
    %116 = arith.addf %110, %115 : vector<1x32xf32>
    %117 = arith.index_cast %94 : i32 to index
    %c4_53 = arith.constant 4 : index
    %118 = memref.load %arg2[%117, %c4_53] : memref<16x5xi32, #tpu.memory_space<smem>>
    %c64_i32_54 = arith.constant 64 : i32
    %119 = arith.addi %c64_i32_54, %118 : i32
    %120 = arith.index_cast %119 : i32 to index
    %c0_55 = arith.constant 0 : index
    %121 = vector.load %arg4[%120, %c0_55] : memref<72x32xf32, #tpu.memory_space<vmem>>, vector<1x32xf32>
    %122 = arith.addf %116, %121 : vector<1x32xf32>
    %c3_56 = arith.constant 3 : index
    %c0_57 = arith.constant 0 : index
    %123 = vector.load %arg11[%c3_56, %c0_57] : memref<8x32xf32, #tpu.memory_space<vmem>>, vector<1x32xf32>
    tpu.vector_store %arg11[%c3_56, %c0_57], %122 {strides = array<i32>} : memref<8x32xf32, #tpu.memory_space<vmem>>, vector<1x32xf32>,
    %c8_i32_58 = arith.constant 8 : i32
    %124 = arith.muli %arg0, %c8_i32_58 : i32
    %c4_i32 = arith.constant 4 : i32
    %125 = arith.addi %124, %c4_i32 : i32
    %126 = arith.index_cast %125 : i32 to index
    %c0_59 = arith.constant 0 : index
    %127 = memref.load %arg2[%126, %c0_59] : memref<16x5xi32, #tpu.memory_space<smem>>
    %128 = arith.index_cast %127 : i32 to index
    %c0_60 = arith.constant 0 : index
    %129 = vector.load %arg4[%128, %c0_60] : memref<72x32xf32, #tpu.memory_space<vmem>>, vector<1x32xf32>
    %130 = arith.index_cast %125 : i32 to index
    %c1_61 = arith.constant 1 : index
    %131 = memref.load %arg2[%130, %c1_61] : memref<16x5xi32, #tpu.memory_space<smem>>
    %c16_i32_62 = arith.constant 16 : i32
    %132 = arith.addi %c16_i32_62, %131 : i32
    %133 = arith.index_cast %132 : i32 to index
    %c0_63 = arith.constant 0 : index
    %134 = vector.load %arg4[%133, %c0_63] : memref<72x32xf32, #tpu.memory_space<vmem>>, vector<1x32xf32>
    %135 = arith.addf %129, %134 : vector<1x32xf32>
    %136 = arith.index_cast %125 : i32 to index
    %c2_64 = arith.constant 2 : index
    %137 = memref.load %arg2[%136, %c2_64] : memref<16x5xi32, #tpu.memory_space<smem>>
    %c32_i32_65 = arith.constant 32 : i32
    %138 = arith.addi %c32_i32_65, %137 : i32
    %139 = arith.index_cast %138 : i32 to index
    %c0_66 = arith.constant 0 : index
    %140 = vector.load %arg4[%139, %c0_66] : memref<72x32xf32, #tpu.memory_space<vmem>>, vector<1x32xf32>
    %141 = arith.addf %135, %140 : vector<1x32xf32>
    %142 = arith.index_cast %125 : i32 to index
    %c3_67 = arith.constant 3 : index
    %143 = memref.load %arg2[%142, %c3_67] : memref<16x5xi32, #tpu.memory_space<smem>>
    %c48_i32_68 = arith.constant 48 : i32
    %144 = arith.addi %c48_i32_68, %143 : i32
    %145 = arith.index_cast %144 : i32 to index
    %c0_69 = arith.constant 0 : index
    %146 = vector.load %arg4[%145, %c0_69] : memref<72x32xf32, #tpu.memory_space<vmem>>, vector<1x32xf32>
    %147 = arith.addf %141, %146 : vector<1x32xf32>
    %148 = arith.index_cast %125 : i32 to index
    %c4_70 = arith.constant 4 : index
    %149 = memref.load %arg2[%148, %c4_70] : memref<16x5xi32, #tpu.memory_space<smem>>
    %c64_i32_71 = arith.constant 64 : i32
    %150 = arith.addi %c64_i32_71, %149 : i32
    %151 = arith.index_cast %150 : i32 to index
    %c0_72 = arith.constant 0 : index
    %152 = vector.load %arg4[%151, %c0_72] : memref<72x32xf32, #tpu.memory_space<vmem>>, vector<1x32xf32>
    %153 = arith.addf %147, %152 : vector<1x32xf32>
    %c4_73 = arith.constant 4 : index
    %c0_74 = arith.constant 0 : index
    %154 = vector.load %arg11[%c4_73, %c0_74] : memref<8x32xf32, #tpu.memory_space<vmem>>, vector<1x32xf32>
    tpu.vector_store %arg11[%c4_73, %c0_74], %153 {strides = array<i32>} : memref<8x32xf32, #tpu.memory_space<vmem>>, vector<1x32xf32>,
    %c8_i32_75 = arith.constant 8 : i32
    %155 = arith.muli %arg0, %c8_i32_75 : i32
    %c5_i32 = arith.constant 5 : i32
    %156 = arith.addi %155, %c5_i32 : i32
    %157 = arith.index_cast %156 : i32 to index
    %c0_76 = arith.constant 0 : index
    %158 = memref.load %arg2[%157, %c0_76] : memref<16x5xi32, #tpu.memory_space<smem>>
    %159 = arith.index_cast %158 : i32 to index
    %c0_77 = arith.constant 0 : index
    %160 = vector.load %arg4[%159, %c0_77] : memref<72x32xf32, #tpu.memory_space<vmem>>, vector<1x32xf32>
    %161 = arith.index_cast %156 : i32 to index
    %c1_78 = arith.constant 1 : index
    %162 = memref.load %arg2[%161, %c1_78] : memref<16x5xi32, #tpu.memory_space<smem>>
    %c16_i32_79 = arith.constant 16 : i32
    %163 = arith.addi %c16_i32_79, %162 : i32
    %164 = arith.index_cast %163 : i32 to index
    %c0_80 = arith.constant 0 : index
    %165 = vector.load %arg4[%164, %c0_80] : memref<72x32xf32, #tpu.memory_space<vmem>>, vector<1x32xf32>
    %166 = arith.addf %160, %165 : vector<1x32xf32>
    %167 = arith.index_cast %156 : i32 to index
    %c2_81 = arith.constant 2 : index
    %168 = memref.load %arg2[%167, %c2_81] : memref<16x5xi32, #tpu.memory_space<smem>>
    %c32_i32_82 = arith.constant 32 : i32
    %169 = arith.addi %c32_i32_82, %168 : i32
    %170 = arith.index_cast %169 : i32 to index
    %c0_83 = arith.constant 0 : index
    %171 = vector.load %arg4[%170, %c0_83] : memref<72x32xf32, #tpu.memory_space<vmem>>, vector<1x32xf32>
    %172 = arith.addf %166, %171 : vector<1x32xf32>
    %173 = arith.index_cast %156 : i32 to index
    %c3_84 = arith.constant 3 : index
    %174 = memref.load %arg2[%173, %c3_84] : memref<16x5xi32, #tpu.memory_space<smem>>
    %c48_i32_85 = arith.constant 48 : i32
    %175 = arith.addi %c48_i32_85, %174 : i32
    %176 = arith.index_cast %175 : i32 to index
    %c0_86 = arith.constant 0 : index
    %177 = vector.load %arg4[%176, %c0_86] : memref<72x32xf32, #tpu.memory_space<vmem>>, vector<1x32xf32>
    %178 = arith.addf %172, %177 : vector<1x32xf32>
    %179 = arith.index_cast %156 : i32 to index
    %c4_87 = arith.constant 4 : index
    %180 = memref.load %arg2[%179, %c4_87] : memref<16x5xi32, #tpu.memory_space<smem>>
    %c64_i32_88 = arith.constant 64 : i32
    %181 = arith.addi %c64_i32_88, %180 : i32
    %182 = arith.index_cast %181 : i32 to index
    %c0_89 = arith.constant 0 : index
    %183 = vector.load %arg4[%182, %c0_89] : memref<72x32xf32, #tpu.memory_space<vmem>>, vector<1x32xf32>
    %184 = arith.addf %178, %183 : vector<1x32xf32>
    %c5 = arith.constant 5 : index
    %c0_90 = arith.constant 0 : index
    %185 = vector.load %arg11[%c5, %c0_90] : memref<8x32xf32, #tpu.memory_space<vmem>>, vector<1x32xf32>
    tpu.vector_store %arg11[%c5, %c0_90], %184 {strides = array<i32>} : memref<8x32xf32, #tpu.memory_space<vmem>>, vector<1x32xf32>,
    %c8_i32_91 = arith.constant 8 : i32
    %186 = arith.muli %arg0, %c8_i32_91 : i32
    %c6_i32 = arith.constant 6 : i32
    %187 = arith.addi %186, %c6_i32 : i32
    %188 = arith.index_cast %187 : i32 to index
    %c0_92 = arith.constant 0 : index
    %189 = memref.load %arg2[%188, %c0_92] : memref<16x5xi32, #tpu.memory_space<smem>>
    %190 = arith.index_cast %189 : i32 to index
    %c0_93 = arith.constant 0 : index
    %191 = vector.load %arg4[%190, %c0_93] : memref<72x32xf32, #tpu.memory_space<vmem>>, vector<1x32xf32>
    %192 = arith.index_cast %187 : i32 to index
    %c1_94 = arith.constant 1 : index
    %193 = memref.load %arg2[%192, %c1_94] : memref<16x5xi32, #tpu.memory_space<smem>>
    %c16_i32_95 = arith.constant 16 : i32
    %194 = arith.addi %c16_i32_95, %193 : i32
    %195 = arith.index_cast %194 : i32 to index
    %c0_96 = arith.constant 0 : index
    %196 = vector.load %arg4[%195, %c0_96] : memref<72x32xf32, #tpu.memory_space<vmem>>, vector<1x32xf32>
    %197 = arith.addf %191, %196 : vector<1x32xf32>
    %198 = arith.index_cast %187 : i32 to index
    %c2_97 = arith.constant 2 : index
    %199 = memref.load %arg2[%198, %c2_97] : memref<16x5xi32, #tpu.memory_space<smem>>
    %c32_i32_98 = arith.constant 32 : i32
    %200 = arith.addi %c32_i32_98, %199 : i32
    %201 = arith.index_cast %200 : i32 to index
    %c0_99 = arith.constant 0 : index
    %202 = vector.load %arg4[%201, %c0_99] : memref<72x32xf32, #tpu.memory_space<vmem>>, vector<1x32xf32>
    %203 = arith.addf %197, %202 : vector<1x32xf32>
    %204 = arith.index_cast %187 : i32 to index
    %c3_100 = arith.constant 3 : index
    %205 = memref.load %arg2[%204, %c3_100] : memref<16x5xi32, #tpu.memory_space<smem>>
    %c48_i32_101 = arith.constant 48 : i32
    %206 = arith.addi %c48_i32_101, %205 : i32
    %207 = arith.index_cast %206 : i32 to index
    %c0_102 = arith.constant 0 : index
    %208 = vector.load %arg4[%207, %c0_102] : memref<72x32xf32, #tpu.memory_space<vmem>>, vector<1x32xf32>
    %209 = arith.addf %203, %208 : vector<1x32xf32>
    %210 = arith.index_cast %187 : i32 to index
    %c4_103 = arith.constant 4 : index
    %211 = memref.load %arg2[%210, %c4_103] : memref<16x5xi32, #tpu.memory_space<smem>>
    %c64_i32_104 = arith.constant 64 : i32
    %212 = arith.addi %c64_i32_104, %211 : i32
    %213 = arith.index_cast %212 : i32 to index
    %c0_105 = arith.constant 0 : index
    %214 = vector.load %arg4[%213, %c0_105] : memref<72x32xf32, #tpu.memory_space<vmem>>, vector<1x32xf32>
    %215 = arith.addf %209, %214 : vector<1x32xf32>
    %c6 = arith.constant 6 : index
    %c0_106 = arith.constant 0 : index
    %216 = vector.load %arg11[%c6, %c0_106] : memref<8x32xf32, #tpu.memory_space<vmem>>, vector<1x32xf32>
    tpu.vector_store %arg11[%c6, %c0_106], %215 {strides = array<i32>} : memref<8x32xf32, #tpu.memory_space<vmem>>, vector<1x32xf32>,
    %c8_i32_107 = arith.constant 8 : i32
    %217 = arith.muli %arg0, %c8_i32_107 : i32
    %c7_i32 = arith.constant 7 : i32
    %218 = arith.addi %217, %c7_i32 : i32
    %219 = arith.index_cast %218 : i32 to index
    %c0_108 = arith.constant 0 : index
    %220 = memref.load %arg2[%219, %c0_108] : memref<16x5xi32, #tpu.memory_space<smem>>
    %221 = arith.index_cast %220 : i32 to index
    %c0_109 = arith.constant 0 : index
    %222 = vector.load %arg4[%221, %c0_109] : memref<72x32xf32, #tpu.memory_space<vmem>>, vector<1x32xf32>
    %223 = arith.index_cast %218 : i32 to index
    %c1_110 = arith.constant 1 : index
    %224 = memref.load %arg2[%223, %c1_110] : memref<16x5xi32, #tpu.memory_space<smem>>
    %c16_i32_111 = arith.constant 16 : i32
    %225 = arith.addi %c16_i32_111, %224 : i32
    %226 = arith.index_cast %225 : i32 to index
    %c0_112 = arith.constant 0 : index
    %227 = vector.load %arg4[%226, %c0_112] : memref<72x32xf32, #tpu.memory_space<vmem>>, vector<1x32xf32>
    %228 = arith.addf %222, %227 : vector<1x32xf32>
    %229 = arith.index_cast %218 : i32 to index
    %c2_113 = arith.constant 2 : index
    %230 = memref.load %arg2[%229, %c2_113] : memref<16x5xi32, #tpu.memory_space<smem>>
    %c32_i32_114 = arith.constant 32 : i32
    %231 = arith.addi %c32_i32_114, %230 : i32
    %232 = arith.index_cast %231 : i32 to index
    %c0_115 = arith.constant 0 : index
    %233 = vector.load %arg4[%232, %c0_115] : memref<72x32xf32, #tpu.memory_space<vmem>>, vector<1x32xf32>
    %234 = arith.addf %228, %233 : vector<1x32xf32>
    %235 = arith.index_cast %218 : i32 to index
    %c3_116 = arith.constant 3 : index
    %236 = memref.load %arg2[%235, %c3_116] : memref<16x5xi32, #tpu.memory_space<smem>>
    %c48_i32_117 = arith.constant 48 : i32
    %237 = arith.addi %c48_i32_117, %236 : i32
    %238 = arith.index_cast %237 : i32 to index
    %c0_118 = arith.constant 0 : index
    %239 = vector.load %arg4[%238, %c0_118] : memref<72x32xf32, #tpu.memory_space<vmem>>, vector<1x32xf32>
    %240 = arith.addf %234, %239 : vector<1x32xf32>
    %241 = arith.index_cast %218 : i32 to index
    %c4_119 = arith.constant 4 : index
    %242 = memref.load %arg2[%241, %c4_119] : memref<16x5xi32, #tpu.memory_space<smem>>
    %c64_i32_120 = arith.constant 64 : i32
    %243 = arith.addi %c64_i32_120, %242 : i32
    %244 = arith.index_cast %243 : i32 to index
    %c0_121 = arith.constant 0 : index
    %245 = vector.load %arg4[%244, %c0_121] : memref<72x32xf32, #tpu.memory_space<vmem>>, vector<1x32xf32>
    %246 = arith.addf %240, %245 : vector<1x32xf32>
    %c7 = arith.constant 7 : index
    %c0_122 = arith.constant 0 : index
    %247 = vector.load %arg11[%c7, %c0_122] : memref<8x32xf32, #tpu.memory_space<vmem>>, vector<1x32xf32>
    tpu.vector_store %arg11[%c7, %c0_122], %246 {strides = array<i32>} : memref<8x32xf32, #tpu.memory_space<vmem>>, vector<1x32xf32>,
    %c0_123 = arith.constant 0 : index
    %c0_124 = arith.constant 0 : index
    %248 = vector.load %arg11[%c0_123, %c0_124] : memref<8x32xf32, #tpu.memory_space<vmem>>, vector<8x32xf32>
    %cst = arith.constant 0.000000e+00 : f32
    %249 = vector.broadcast %cst : f32 to vector<8x32xf32>
    %250 = arith.maximumf %248, %249 : vector<8x32xf32>
    %c0_125 = arith.constant 0 : index
    %c0_126 = arith.constant 0 : index
    %251 = vector.load %arg5[%c0_125, %c0_126] : memref<32x32xf32, #tpu.memory_space<vmem>>, vector<32x32xf32>
    %cst_127 = arith.constant dense<0.000000e+00> : vector<8x32xf32>
    %252 = tpu.matmul %250, %251, %cst_127 {dimension_numbers = #tpu.dot_dimension_numbers<[1], [0], [0], [1], [0, 0, 1, 1], [], []>} : vector<8x32xf32>, vector<32x32xf32>, vector<8x32xf32> -> vector<8x32xf32>
    %c0_128 = arith.constant 0 : index
    %c0_129 = arith.constant 0 : index
    %253 = vector.load %arg6[%c0_128, %c0_129] : memref<1x32xf32, #tpu.memory_space<vmem>>, vector<1x32xf32>
    %254 = vector.broadcast %253 : vector<1x32xf32> to vector<8x32xf32>
    %255 = arith.addf %252, %254 : vector<8x32xf32>
    %c0_130 = arith.constant 0 : index
    %c0_131 = arith.constant 0 : index
    %c0_132 = arith.constant 0 : index
    %256 = vector.load %arg3[%c0_130, %c0_131, %c0_132] : memref<1x1x1024xi32, #tpu.memory_space<vmem>>, vector<1x1x1024xi32>
    %257 = vector.shape_cast %256 : vector<1x1x1024xi32> to vector<1x1024xi32>
    %258 = tpu.iota {dimensions = array<i32: 0>} : vector<16x1024xi32>
    %259 = vector.broadcast %257 : vector<1x1024xi32> to vector<16x1024xi32>
    %260 = arith.cmpi eq, %258, %259 : vector<16x1024xi32>
    %261 = arith.extui %260 : vector<16x1024xi1> to vector<16x1024xi32>
    %262 = arith.sitofp %261 : vector<16x1024xi32> to vector<16x1024xf32>
    %c0_133 = arith.constant 0 : index
    %c0_134 = arith.constant 0 : index
    %263 = vector.load %arg7[%c0_133, %c0_134] : memref<32x16xf32, #tpu.memory_space<vmem>>, vector<32x16xf32>
    %cst_135 = arith.constant dense<0.000000e+00> : vector<32x1024xf32>
    %264 = tpu.matmul %263, %262, %cst_135 {dimension_numbers = #tpu.dot_dimension_numbers<[1], [0], [0], [1], [0, 0, 1, 1], [], []>} : vector<32x16xf32>, vector<16x1024xf32>, vector<32x1024xf32> -> vector<32x1024xf32>
    %c0_136 = arith.constant 0 : index
    %c0_137 = arith.constant 0 : index
    %265 = vector.load %arg8[%c0_136, %c0_137] : memref<32x32xf32, #tpu.memory_space<vmem>>, vector<32x32xf32>
    %cst_138 = arith.constant 0.000000e+00 : f32
    %266 = vector.broadcast %cst_138 : f32 to vector<32x1024xf32>
    %267 = arith.maximumf %264, %266 : vector<32x1024xf32>
    %cst_139 = arith.constant dense<0.000000e+00> : vector<32x1024xf32>
    %268 = tpu.matmul %265, %267, %cst_139 {dimension_numbers = #tpu.dot_dimension_numbers<[1], [0], [0], [1], [0, 0, 1, 1], [], []>} : vector<32x32xf32>, vector<32x1024xf32>, vector<32x1024xf32> -> vector<32x1024xf32>
    %c0_140 = arith.constant 0 : index
    %c0_141 = arith.constant 0 : index
    %269 = vector.load %arg9[%c0_140, %c0_141] : memref<32x1xf32, #tpu.memory_space<vmem>>, vector<32x1xf32>
    %270 = vector.broadcast %269 : vector<32x1xf32> to vector<32x1024xf32>
    %271 = arith.addf %268, %270 : vector<32x1024xf32>
    %cst_142 = arith.constant dense<0.000000e+00> : vector<8x1024xf32>
    %272 = tpu.matmul %255, %271, %cst_142 {dimension_numbers = #tpu.dot_dimension_numbers<[1], [0], [0], [1], [0, 0, 1, 1], [], []>} : vector<8x32xf32>, vector<32x1024xf32>, vector<8x1024xf32> -> vector<8x1024xf32>
    %273 = tpu.iota {dimensions = array<i32: 1>} : vector<1x128xi32>
    %c8_i32_143 = arith.constant 8 : i32
    %274 = arith.muli %arg0, %c8_i32_143 : i32
    %c0_i32_144 = arith.constant 0 : i32
    %275 = arith.addi %274, %c0_i32_144 : i32
    %276 = vector.extract_strided_slice %272 {offsets = [0, 0], sizes = [1, 128], strides = [1, 1]} : vector<8x1024xf32> to vector<1x128xf32>
    %277 = arith.index_cast %275 : i32 to index
    %278 = memref.load %arg1[%277] : memref<16xi32, #tpu.memory_space<smem>>
    %279 = vector.broadcast %278 : i32 to vector<1x128xi32>
    %280 = arith.cmpi slt, %273, %279 : vector<1x128xi32>
    %cst_145 = arith.constant -1.000000e+30 : f32
    %281 = vector.broadcast %cst_145 : f32 to vector<1x128xf32>
    %282 = arith.select %280, %276, %281 : vector<1x128xi1>, vector<1x128xf32>
    %c8_i32_146 = arith.constant 8 : i32
    %283 = arith.muli %arg0, %c8_i32_146 : i32
    %c1_i32_147 = arith.constant 1 : i32
    %284 = arith.addi %283, %c1_i32_147 : i32
    %285 = vector.extract_strided_slice %272 {offsets = [1, 128], sizes = [1, 128], strides = [1, 1]} : vector<8x1024xf32> to vector<1x128xf32>
    %286 = arith.index_cast %284 : i32 to index
    %287 = memref.load %arg1[%286] : memref<16xi32, #tpu.memory_space<smem>>
    %288 = vector.broadcast %287 : i32 to vector<1x128xi32>
    %289 = arith.cmpi slt, %273, %288 : vector<1x128xi32>
    %cst_148 = arith.constant -1.000000e+30 : f32
    %290 = vector.broadcast %cst_148 : f32 to vector<1x128xf32>
    %291 = arith.select %289, %285, %290 : vector<1x128xi1>, vector<1x128xf32>
    %c8_i32_149 = arith.constant 8 : i32
    %292 = arith.muli %arg0, %c8_i32_149 : i32
    %c2_i32_150 = arith.constant 2 : i32
    %293 = arith.addi %292, %c2_i32_150 : i32
    %294 = vector.extract_strided_slice %272 {offsets = [2, 256], sizes = [1, 128], strides = [1, 1]} : vector<8x1024xf32> to vector<1x128xf32>
    %295 = arith.index_cast %293 : i32 to index
    %296 = memref.load %arg1[%295] : memref<16xi32, #tpu.memory_space<smem>>
    %297 = vector.broadcast %296 : i32 to vector<1x128xi32>
    %298 = arith.cmpi slt, %273, %297 : vector<1x128xi32>
    %cst_151 = arith.constant -1.000000e+30 : f32
    %299 = vector.broadcast %cst_151 : f32 to vector<1x128xf32>
    %300 = arith.select %298, %294, %299 : vector<1x128xi1>, vector<1x128xf32>
    %c8_i32_152 = arith.constant 8 : i32
    %301 = arith.muli %arg0, %c8_i32_152 : i32
    %c3_i32_153 = arith.constant 3 : i32
    %302 = arith.addi %301, %c3_i32_153 : i32
    %303 = vector.extract_strided_slice %272 {offsets = [3, 384], sizes = [1, 128], strides = [1, 1]} : vector<8x1024xf32> to vector<1x128xf32>
    %304 = arith.index_cast %302 : i32 to index
    %305 = memref.load %arg1[%304] : memref<16xi32, #tpu.memory_space<smem>>
    %306 = vector.broadcast %305 : i32 to vector<1x128xi32>
    %307 = arith.cmpi slt, %273, %306 : vector<1x128xi32>
    %cst_154 = arith.constant -1.000000e+30 : f32
    %308 = vector.broadcast %cst_154 : f32 to vector<1x128xf32>
    %309 = arith.select %307, %303, %308 : vector<1x128xi1>, vector<1x128xf32>
    %c8_i32_155 = arith.constant 8 : i32
    %310 = arith.muli %arg0, %c8_i32_155 : i32
    %c4_i32_156 = arith.constant 4 : i32
    %311 = arith.addi %310, %c4_i32_156 : i32
    %312 = vector.extract_strided_slice %272 {offsets = [4, 512], sizes = [1, 128], strides = [1, 1]} : vector<8x1024xf32> to vector<1x128xf32>
    %313 = arith.index_cast %311 : i32 to index
    %314 = memref.load %arg1[%313] : memref<16xi32, #tpu.memory_space<smem>>
    %315 = vector.broadcast %314 : i32 to vector<1x128xi32>
    %316 = arith.cmpi slt, %273, %315 : vector<1x128xi32>
    %cst_157 = arith.constant -1.000000e+30 : f32
    %317 = vector.broadcast %cst_157 : f32 to vector<1x128xf32>
    %318 = arith.select %316, %312, %317 : vector<1x128xi1>, vector<1x128xf32>
    %c8_i32_158 = arith.constant 8 : i32
    %319 = arith.muli %arg0, %c8_i32_158 : i32
    %c5_i32_159 = arith.constant 5 : i32
    %320 = arith.addi %319, %c5_i32_159 : i32
    %321 = vector.extract_strided_slice %272 {offsets = [5, 640], sizes = [1, 128], strides = [1, 1]} : vector<8x1024xf32> to vector<1x128xf32>
    %322 = arith.index_cast %320 : i32 to index
    %323 = memref.load %arg1[%322] : memref<16xi32, #tpu.memory_space<smem>>
    %324 = vector.broadcast %323 : i32 to vector<1x128xi32>
    %325 = arith.cmpi slt, %273, %324 : vector<1x128xi32>
    %cst_160 = arith.constant -1.000000e+30 : f32
    %326 = vector.broadcast %cst_160 : f32 to vector<1x128xf32>
    %327 = arith.select %325, %321, %326 : vector<1x128xi1>, vector<1x128xf32>
    %c8_i32_161 = arith.constant 8 : i32
    %328 = arith.muli %arg0, %c8_i32_161 : i32
    %c6_i32_162 = arith.constant 6 : i32
    %329 = arith.addi %328, %c6_i32_162 : i32
    %330 = vector.extract_strided_slice %272 {offsets = [6, 768], sizes = [1, 128], strides = [1, 1]} : vector<8x1024xf32> to vector<1x128xf32>
    %331 = arith.index_cast %329 : i32 to index
    %332 = memref.load %arg1[%331] : memref<16xi32, #tpu.memory_space<smem>>
    %333 = vector.broadcast %332 : i32 to vector<1x128xi32>
    %334 = arith.cmpi slt, %273, %333 : vector<1x128xi32>
    %cst_163 = arith.constant -1.000000e+30 : f32
    %335 = vector.broadcast %cst_163 : f32 to vector<1x128xf32>
    %336 = arith.select %334, %330, %335 : vector<1x128xi1>, vector<1x128xf32>
    %c8_i32_164 = arith.constant 8 : i32
    %337 = arith.muli %arg0, %c8_i32_164 : i32
    %c7_i32_165 = arith.constant 7 : i32
    %338 = arith.addi %337, %c7_i32_165 : i32
    %339 = vector.extract_strided_slice %272 {offsets = [7, 896], sizes = [1, 128], strides = [1, 1]} : vector<8x1024xf32> to vector<1x128xf32>
    %340 = arith.index_cast %338 : i32 to index
    %341 = memref.load %arg1[%340] : memref<16xi32, #tpu.memory_space<smem>>
    %342 = vector.broadcast %341 : i32 to vector<1x128xi32>
    %343 = arith.cmpi slt, %273, %342 : vector<1x128xi32>
    %cst_166 = arith.constant -1.000000e+30 : f32
    %344 = vector.broadcast %cst_166 : f32 to vector<1x128xf32>
    %345 = arith.select %343, %339, %344 : vector<1x128xi1>, vector<1x128xf32>
    %346 = tpu.concatenate %282, %291, %300, %309, %318, %327, %336, %345 in 0 : vector<1x128xf32>, vector<1x128xf32>, vector<1x128xf32>, vector<1x128xf32>, vector<1x128xf32>, vector<1x128xf32>, vector<1x128xf32>, vector<1x128xf32> -> vector<8x128xf32>
    %cst_167 = arith.constant dense<0xFF800000> : vector<8xf32>
    %347 = vector.multi_reduction <maximumf>, %346, %cst_167 [1] : vector<8x128xf32> to vector<8xf32>
    %348 = vector.shape_cast %347 : vector<8xf32> to vector<8x1xf32>
    %349 = vector.broadcast %348 : vector<8x1xf32> to vector<8x128xf32>
    %350 = arith.subf %346, %349 : vector<8x128xf32>
    %351 = math.exp %350 : vector<8x128xf32>
    %cst_168 = arith.constant dense<0.000000e+00> : vector<8xf32>
    %352 = vector.multi_reduction <add>, %351, %cst_168 [1] : vector<8x128xf32> to vector<8xf32>
    %353 = vector.shape_cast %352 : vector<8xf32> to vector<8x1xf32>
    %354 = vector.broadcast %353 : vector<8x1xf32> to vector<8x128xf32>
    %355 = arith.divf %351, %354 : vector<8x128xf32>
    %c0_169 = arith.constant 0 : index
    %c0_170 = arith.constant 0 : index
    %356 = vector.load %arg10[%c0_169, %c0_170] : memref<8x128xf32, #tpu.memory_space<vmem>>, vector<8x128xf32>
    tpu.vector_store %arg10[%c0_169, %c0_170], %355 {strides = array<i32>} : memref<8x128xf32, #tpu.memory_space<vmem>>, vector<8x128xf32>,
    return
  }
  func.func @transform_0(%arg0: i32, %arg1: memref<16xi32, #tpu.memory_space<smem>>, %arg2: memref<16x5xi32, #tpu.memory_space<smem>>) -> (i32, i32, i32) {
    %c0_i32 = arith.constant 0 : i32
    %c0_i32_0 = arith.constant 0 : i32
    %c0_i32_1 = arith.constant 0 : i32
    return %arg0, %c0_i32, %c0_i32_0 : i32, i32, i32
  }
  func.func @transform_1(%arg0: i32, %arg1: memref<16xi32, #tpu.memory_space<smem>>, %arg2: memref<16x5xi32, #tpu.memory_space<smem>>) -> (i32, i32) {
    %c0_i32 = arith.constant 0 : i32
    %c0_i32_0 = arith.constant 0 : i32
    %c0_i32_1 = arith.constant 0 : i32
    return %c0_i32, %c0_i32_0 : i32, i32
  }
  func.func @transform_2(%arg0: i32, %arg1: memref<16xi32, #tpu.memory_space<smem>>, %arg2: memref<16x5xi32, #tpu.memory_space<smem>>) -> (i32, i32) {
    %c0_i32 = arith.constant 0 : i32
    %c0_i32_0 = arith.constant 0 : i32
    %c0_i32_1 = arith.constant 0 : i32
    return %c0_i32, %c0_i32_0 : i32, i32
  }
  func.func @transform_3(%arg0: i32, %arg1: memref<16xi32, #tpu.memory_space<smem>>, %arg2: memref<16x5xi32, #tpu.memory_space<smem>>) -> (i32, i32) {
    %c0_i32 = arith.constant 0 : i32
    %c0_i32_0 = arith.constant 0 : i32
    %c0_i32_1 = arith.constant 0 : i32
    return %c0_i32, %c0_i32_0 : i32, i32
  }
  func.func @transform_4(%arg0: i32, %arg1: memref<16xi32, #tpu.memory_space<smem>>, %arg2: memref<16x5xi32, #tpu.memory_space<smem>>) -> (i32, i32) {
    %c0_i32 = arith.constant 0 : i32
    %c0_i32_0 = arith.constant 0 : i32
    %c0_i32_1 = arith.constant 0 : i32
    return %c0_i32, %c0_i32_0 : i32, i32
  }
  func.func @transform_5(%arg0: i32, %arg1: memref<16xi32, #tpu.memory_space<smem>>, %arg2: memref<16x5xi32, #tpu.memory_space<smem>>) -> (i32, i32) {
    %c0_i32 = arith.constant 0 : i32
    %c0_i32_0 = arith.constant 0 : i32
    %c0_i32_1 = arith.constant 0 : i32
    return %c0_i32, %c0_i32_0 : i32, i32
  }
  func.func @transform_6(%arg0: i32, %arg1: memref<16xi32, #tpu.memory_space<smem>>, %arg2: memref<16x5xi32, #tpu.memory_space<smem>>) -> (i32, i32) {
    %c0_i32 = arith.constant 0 : i32
    %c0_i32_0 = arith.constant 0 : i32
    %c0_i32_1 = arith.constant 0 : i32
    return %c0_i32, %c0_i32_0 : i32, i32
  }
  func.func @transform_7(%arg0: i32, %arg1: memref<16xi32, #tpu.memory_space<smem>>, %arg2: memref<16x5xi32, #tpu.memory_space<smem>>) -> (i32, i32) {
    %c0_i32 = arith.constant 0 : i32
    %c0_i32_0 = arith.constant 0 : i32
    return %arg0, %c0_i32 : i32, i32
  }
}

</mosaic_0001>

<llo_original>
// kernel: policy_forward_batch.1
$region0: #{policy_forward_batch.1}
  #allocation0 [shape = 'u32[]', space=smem, size = 0x4, offset = 0x4, fixed_abs, tag = 'smem constant byte address 0x4 - core index']
  #allocation1 [shape = 'u32[144,128]{1,0:T(1,128)}', space=vmem, size = 0x12000, scoped, tag = 'internal scratch']
  #allocation2 [shape = 'f32[8,32]{1,0:T(8,128)}', space=vmem, size = 0x1000, scoped, tag = 'scratch operand']
  #allocation3 [shape = 's32[1]{0}', space=sflag, size = 0x4, scoped, tag = 'scoped memory for policy_forward_batch.1']
  #allocation4 [shape = 'u8[512]{0}', space=smem, size = 0x200, scoped, tag = 'prefetched SMEM operand 0']
  #allocation5 [shape = 'u8[8192]{0}', space=smem, size = 0x2000, scoped, tag = 'prefetched SMEM operand 1']
  %s0 = inlined_call_operand.vmem [shape: s32[16], index: 0, kind: input, shape index: {}]
  %s1 = inlined_call_operand.vmem [shape: s32[16,5], index: 1, kind: input, shape index: {}]
  %s2 = inlined_call_operand.vmem [shape: s32[2,1,1024], index: 2, kind: input, shape index: {}]
  %s3 = inlined_call_operand.vmem [shape: f32[72,32], index: 3, kind: input, shape index: {}]
  %s4 = inlined_call_operand.vmem [shape: f32[32,32], index: 4, kind: input, shape index: {}]
  %s5 = inlined_call_operand.vmem [shape: f32[1,32], index: 5, kind: input, shape index: {}]
  %s6 = inlined_call_operand.vmem [shape: f32[32,16], index: 6, kind: input, shape index: {}]
  %s7 = inlined_call_operand.vmem [shape: f32[32,32], index: 7, kind: input, shape index: {}]
  %s8 = inlined_call_operand.vmem [shape: f32[32,1], index: 8, kind: input, shape index: {}]
  %s9 = inlined_call_operand.hbm [shape: f32[16,128], index: 9, kind: output, shape index: {}]
  %s10 = sld [smem:[#allocation0]]
  $region61: #{policy_forward_batch.1} parent=0
    _
  %s12 = ssub.s32 1, %s10
  %s13 = scalar_select 0, %s12, %s10
  %s14 = sshll.u32 %s0, 4
  %s15 = int_to_ptr.vmem [resolvable:$true] %s14
  %17 = dma.vmem_to_smem %s15, 16, [#allocation4], [#allocation3]
  %s18 = sshll.u32 %s1, 4
  %s19 = int_to_ptr.vmem [resolvable:$true] %s18
  %21 = dma.vmem_to_smem %s19, 256, [#allocation5], [#allocation3]
  %22 = dma.done [#allocation3], 272
  %23 = sfence
  $region1: #{policy_forward_batch.1} parent=0
    #allocation6 [shape = 'u8[8192]{0}', space=vmem, size = 0x2000, scoped, tag = 'output window, operand 0']
    #allocation7 [shape = 's32[2]{0}', space=sflag, size = 0x8, scoped, tag = 'scoped memory for policy_forward_batch.1']
    %24 = vsyncpa [#allocation7], 0
    %s25 = scalar_lea.sflag [#allocation7], 1
    %26 = vsyncpa %s25, 0
    loop: start=0, step=1, limit=4
    $region2: #{policy_forward_batch.1} parent=1 // loop_pre_header
      _
    $region3: #{policy_forward_batch.1} parent=1 // loop_header
      %s28 = sphi 0, %s32
      %p29 = scmp.ge.s32.totalorder %s28, 4
      %s38 = sphi 0, %s40
      %s41 = sphi 0, %s38
      %s42 = sphi 0, %s41
      %s58 = sphi 0, %s42
      %s62 = sphi 0, %s62
      %s64 = sphi 0, %s62
      %s65 = sphi 0, %s64
      %s79 = sphi 0, %s65
      %s83 = sphi 0, %s83
      %s85 = sphi 0, %s83
      %s86 = sphi 0, %s85
      %s100 = sphi 0, %s86
      %s104 = sphi 0, %s104
      %s106 = sphi 0, %s104
      %s107 = sphi 0, %s106
      %s121 = sphi 0, %s107
      %s125 = sphi 0, %s125
      %s127 = sphi 0, %s125
      %s128 = sphi 0, %s127
      %s142 = sphi 0, %s128
      %s146 = sphi 0, %s146
      %s148 = sphi 0, %s146
      %s149 = sphi 0, %s148
      %s163 = sphi 0, %s149
      %s167 = sphi 0, %s167
      %s169 = sphi 0, %s167
      %s170 = sphi 0, %s169
      %s184 = sphi 0, %s170
      %s190 = sphi 0, %s192
      %s193 = sphi 0, %s190
      %s194 = sphi 0, %s193
      %s210 = sphi 0, %s194
    $region4: #{policy_forward_batch.1} parent=1 // loop_header_branch
      %31 = sbr.rel (%p29) target = $region8
    $region5: #{policy_forward_batch.1} parent=1 // loop_body
      %s33 = ssub.s32 %s28, 1
      %s34 = ssub.s32 %s28, 2
      %s35 = sadd.s32 %s28, 1
      %s36 = ssub.s32 %s28, %s35
      %p37 = scmp.eq.s32.totalorder %s36, 0
      %s39 = sadd.s32 %s38, 1
      %s40 = scalar_select %p37, %s38, %s39
      %p43 = pneg %p37
      %p44 = scmp.eq.s32.totalorder %s28, 1
      %p45 = por %p43, %p44
      %p46 = scmp.ne.s32.totalorder %s38, %s41
      %p47 = scmp.eq.s32.totalorder %s28, 0
      %p48 = por %p46, %p47
      %p49 = scmp.ne.s32.totalorder %s38, %s41
      %p50 = scmp.eq.s32.totalorder %s33, 1
      %p51 = por %p49, %p50
      %p52 = scmp.ne.s32.totalorder %s41, %s42
      %p53 = scmp.eq.s32.totalorder %s33, 0
      %p54 = por %p52, %p53
      %p55 = scmp.ne.s32.totalorder %s41, %s42
      %p56 = scmp.eq.s32.totalorder %s34, 1
      %p57 = por %p55, %p56
      %p59 = scmp.ne.s32.totalorder %s42, %s58
      %p60 = scmp.eq.s32.totalorder %s34, 0
      %p61 = por %p59, %p60
      %s63 = sadd.s32 %s62, 1
      %p66 = scmp.eq.s32.totalorder %s28, 1
      %p67 = scmp.ne.s32.totalorder %s62, %s64
      %p68 = scmp.eq.s32.totalorder %s28, 0
      %p69 = por %p67, %p68
      %p70 = scmp.ne.s32.totalorder %s62, %s64
      %p71 = scmp.eq.s32.totalorder %s33, 1
      %p72 = por %p70, %p71
      %p73 = scmp.ne.s32.totalorder %s64, %s65
      %p74 = scmp.eq.s32.totalorder %s33, 0
      %p75 = por %p73, %p74
      %p76 = scmp.ne.s32.totalorder %s64, %s65
      %p77 = scmp.eq.s32.totalorder %s34, 1
      %p78 = por %p76, %p77
      %p80 = scmp.ne.s32.totalorder %s65, %s79
      %p81 = scmp.eq.s32.totalorder %s34, 0
      %p82 = por %p80, %p81
      %s84 = sadd.s32 %s83, 1
      %p87 = scmp.eq.s32.totalorder %s28, 1
      %p88 = scmp.ne.s32.totalorder %s83, %s85
      %p89 = scmp.eq.s32.totalorder %s28, 0
      %p90 = por %p88, %p89
      %p91 = scmp.ne.s32.totalorder %s83, %s85
      %p92 = scmp.eq.s32.totalorder %s33, 1
      %p93 = por %p91, %p92
      %p94 = scmp.ne.s32.totalorder %s85, %s86
      %p95 = scmp.eq.s32.totalorder %s33, 0
      %p96 = por %p94, %p95
      %p97 = scmp.ne.s32.totalorder %s85, %s86
      %p98 = scmp.eq.s32.totalorder %s34, 1
      %p99 = por %p97, %p98
      %p101 = scmp.ne.s32.totalorder %s86, %s100
      %p102 = scmp.eq.s32.totalorder %s34, 0
      %p103 = por %p101, %p102
      %s105 = sadd.s32 %s104, 1
      %p108 = scmp.eq.s32.totalorder %s28, 1
      %p109 = scmp.ne.s32.totalorder %s104, %s106
      %p110 = scmp.eq.s32.totalorder %s28, 0
      %p111 = por %p109, %p110
      %p112 = scmp.ne.s32.totalorder %s104, %s106
      %p113 = scmp.eq.s32.totalorder %s33, 1
      %p114 = por %p112, %p113
      %p115 = scmp.ne.s32.totalorder %s106, %s107
      %p116 = scmp.eq.s32.totalorder %s33, 0
      %p117 = por %p115, %p116
      %p118 = scmp.ne.s32.totalorder %s106, %s107
      %p119 = scmp.eq.s32.totalorder %s34, 1
      %p120 = por %p118, %p119
      %p122 = scmp.ne.s32.totalorder %s107, %s121
      %p123 = scmp.eq.s32.totalorder %s34, 0
      %p124 = por %p122, %p123
      %s126 = sadd.s32 %s125, 1
      %p129 = scmp.eq.s32.totalorder %s28, 1
      %p130 = scmp.ne.s32.totalorder %s125, %s127
      %p131 = scmp.eq.s32.totalorder %s28, 0
      %p132 = por %p130, %p131
      %p133 = scmp.ne.s32.totalorder %s125, %s127
      %p134 = scmp.eq.s32.totalorder %s33, 1
      %p135 = por %p133, %p134
      %p136 = scmp.ne.s32.totalorder %s127, %s128
      %p137 = scmp.eq.s32.totalorder %s33, 0
      %p138 = por %p136, %p137
      %p139 = scmp.ne.s32.totalorder %s127, %s128
      %p140 = scmp.eq.s32.totalorder %s34, 1
      %p141 = por %p139, %p140
      %p143 = scmp.ne.s32.totalorder %s128, %s142
      %p144 = scmp.eq.s32.totalorder %s34, 0
      %p145 = por %p143, %p144
      %s147 = sadd.s32 %s146, 1
      %p150 = scmp.eq.s32.totalorder %s28, 1
      %p151 = scmp.ne.s32.totalorder %s146, %s148
      %p152 = scmp.eq.s32.totalorder %s28, 0
      %p153 = por %p151, %p152
      %p154 = scmp.ne.s32.totalorder %s146, %s148
      %p155 = scmp.eq.s32.totalorder %s33, 1
      %p156 = por %p154, %p155
      %p157 = scmp.ne.s32.totalorder %s148, %s149
      %p158 = scmp.eq.s32.totalorder %s33, 0
      %p159 = por %p157, %p158
      %p160 = scmp.ne.s32.totalorder %s148, %s149
      %p161 = scmp.eq.s32.totalorder %s34, 1
      %p162 = por %p160, %p161
      %p164 = scmp.ne.s32.totalorder %s149, %s163
      %p165 = scmp.eq.s32.totalorder %s34, 0
      %p166 = por %p164, %p165
      %s168 = sadd.s32 %s167, 1
      %p171 = scmp.eq.s32.totalorder %s28, 1
      %p172 = scmp.ne.s32.totalorder %s167, %s169
      %p173 = scmp.eq.s32.totalorder %s28, 0
      %p174 = por %p172, %p173
      %p175 = scmp.ne.s32.totalorder %s167, %s169
      %p176 = scmp.eq.s32.totalorder %s33, 1
      %p177 = por %p175, %p176
      %p178 = scmp.ne.s32.totalorder %s169, %s170
      %p179 = scmp.eq.s32.totalorder %s33, 0
      %p180 = por %p178, %p179
      %p181 = scmp.ne.s32.totalorder %s169, %s170
      %p182 = scmp.eq.s32.totalorder %s34, 1
      %p183 = por %p181, %p182
      %p185 = scmp.ne.s32.totalorder %s170, %s184
      %p186 = scmp.eq.s32.totalorder %s34, 0
      %p187 = por %p185, %p186
      %s188 = ssub.s32 %s28, %s35
      %p189 = scmp.eq.s32.totalorder %s188, 0
      %s191 = sadd.s32 %s190, 1
      %s192 = scalar_select %p189, %s190, %s191
      %p195 = pneg %p189
      %p196 = scmp.eq.s32.totalorder %s28, 1
      %p197 = por %p195, %p196
      %p198 = scmp.ne.s32.totalorder %s190, %s193
      %p199 = scmp.eq.s32.totalorder %s28, 0
      %p200 = por %p198, %p199
      %p201 = scmp.ne.s32.totalorder %s190, %s193
      %p202 = scmp.eq.s32.totalorder %s33, 1
      %p203 = por %p201, %p202
      %p204 = scmp.ne.s32.totalorder %s193, %s194
      %p205 = scmp.eq.s32.totalorder %s33, 0
      %p206 = por %p204, %p205
      %p207 = scmp.ne.s32.totalorder %s193, %s194
      %p208 = scmp.eq.s32.totalorder %s34, 1
      %p209 = por %p207, %p208
      %p211 = scmp.ne.s32.totalorder %s194, %s210
      %p212 = scmp.eq.s32.totalorder %s34, 0
      %p213 = por %p211, %p212
      %p214 = scmp.le.s32.totalorder 1, %s28
      %p215 = scmp.lt.s32.totalorder %s28, 3
      %p216 = pnand %p214, %p215
      %p217 = pneg %p216
      // Predicated region
      $region9: #{policy_forward_batch.1} parent=5 // pred_check
        _
      $region10: #{policy_forward_batch.1} parent=5 // pred_check_branch
        %219 = sbr.rel (%p216) target = $region12
      $region11: #{policy_forward_batch.1} parent=5 // pred_region
        %s220 = ssub.s32 %s28, 1
        // Predicated region
        $region13: #{policy_forward_batch.1} parent=11 // pred_check
          %p221 = pneg %p75
        $region14: #{policy_forward_batch.1} parent=11 // pred_check_branch
          %223 = sbr.rel (%p221) target = $region16
        $region15: #{policy_forward_batch.1} parent=11 // pred_region
          _
        $region16: #{policy_forward_batch.1} parent=11 // pred_fallthru
          _
        // Predicated region
        $region17: #{policy_forward_batch.1} parent=11 // pred_check
          %p224 = pneg %p96
        $region18: #{policy_forward_batch.1} parent=11 // pred_check_branch
          %226 = sbr.rel (%p224) target = $region20
        $region19: #{policy_forward_batch.1} parent=11 // pred_region
          _
        $region20: #{policy_forward_batch.1} parent=11 // pred_fallthru
          _
        // Predicated region
        $region21: #{policy_forward_batch.1} parent=11 // pred_check
          %p227 = pneg %p117
        $region22: #{policy_forward_batch.1} parent=11 // pred_check_branch
          %229 = sbr.rel (%p227) target = $region24
        $region23: #{policy_forward_batch.1} parent=11 // pred_region
          _
        $region24: #{policy_forward_batch.1} parent=11 // pred_fallthru
          _
        // Predicated region
        $region25: #{policy_forward_batch.1} parent=11 // pred_check
          %p230 = pneg %p138
        $region26: #{policy_forward_batch.1} parent=11 // pred_check_branch
          %232 = sbr.rel (%p230) target = $region28
        $region27: #{policy_forward_batch.1} parent=11 // pred_region
          _
        $region28: #{policy_forward_batch.1} parent=11 // pred_fallthru
          _
        // Predicated region
        $region29: #{policy_forward_batch.1} parent=11 // pred_check
          %p233 = pneg %p159
        $region30: #{policy_forward_batch.1} parent=11 // pred_check_branch
          %235 = sbr.rel (%p233) target = $region32
        $region31: #{policy_forward_batch.1} parent=11 // pred_region
          _
        $region32: #{policy_forward_batch.1} parent=11 // pred_fallthru
          _
        // Predicated region
        $region33: #{policy_forward_batch.1} parent=11 // pred_check
          %p236 = pneg %p180
        $region34: #{policy_forward_batch.1} parent=11 // pred_check_branch
          %238 = sbr.rel (%p236) target = $region36
        $region35: #{policy_forward_batch.1} parent=11 // pred_region
          _
        $region36: #{policy_forward_batch.1} parent=11 // pred_fallthru
          _
      $region12: #{policy_forward_batch.1} parent=5 // pred_fallthru
        _
      %p239 = scmp.lt.s32.totalorder %s28, 2
      // Predicated region
      $region37: #{policy_forward_batch.1} parent=5 // pred_check
        %p240 = pneg %p239
      $region38: #{policy_forward_batch.1} parent=5 // pred_check_branch
        %242 = sbr.rel (%p240) target = $region40
      $region39: #{policy_forward_batch.1} parent=5 // pred_region
        // Predicated region
        $region41: #{policy_forward_batch.1} parent=39 // pred_check
          %p243 = pneg %p48
        $region42: #{policy_forward_batch.1} parent=39 // pred_check_branch
          %245 = sbr.rel (%p243) target = $region44
        $region43: #{policy_forward_batch.1} parent=39 // pred_region
          %p246 = scmp.lt.s32.totalorder %s28, 1
          %s247 = scalar_select %p246, %s28, 1
          %s248 = smul.addr %s247, 8
          %s249 = scalar_lea.vmem %s2, %s248
        $region44: #{policy_forward_batch.1} parent=39 // pred_fallthru
          _
      $region40: #{policy_forward_batch.1} parent=5 // pred_fallthru
        _
      %p250 = scmp.le.s32.totalorder 1, %s28
      %p251 = scmp.lt.s32.totalorder %s28, 3
      %p252 = pnand %p250, %p251
      %p253 = pneg %p252
      // Predicated region
      $region45: #{policy_forward_batch.1} parent=5 // pred_check
        _
      $region46: #{policy_forward_batch.1} parent=5 // pred_check_branch
        %255 = sbr.rel (%p252) target = $region48
      $region47: #{policy_forward_batch.1} parent=5 // pred_region
        %s256 = ssub.s32 %s28, 1
        %p257 = scmp.lt.s32.totalorder %s33, 1
        %s258 = scalar_select %p257, %s33, 1
        %s259 = smul.addr %s258, 8
        %s260 = scalar_lea.vmem %s2, %s259
        %p261 = pneg %p54
        %p262 = pneg %p51
        %p263 = pneg %p75
        %p264 = pneg %p72
        %p265 = pneg %p96
        %p266 = pneg %p93
        %p267 = pneg %p117
        %p268 = pneg %p114
        %p269 = pneg %p138
        %p270 = pneg %p135
        %p271 = pneg %p159
        %p272 = pneg %p156
        %p273 = pneg %p180
        %p274 = pneg %p177
        %p275 = pneg %p206
        %p276 = pneg %p203
        %s277 = sand.u32 %s193, 1
        %s278 = scalar_lea.sflag [#allocation7], %s277
        %s279 = sand.u32 %s193, 1
        %s280 = smul.addr %s279, 8
        %s281 = scalar_lea.vmem [#allocation6], %s280
        %p282 = scmp.lt.s32.totalorder %s33, 1
        %s283 = scalar_select %p282, %s33, 1
        %s284 = smul.addr %s283, 8
        %s285 = scalar_lea.vmem %s2, %s284
        %s286 = smul.u32 %s33, 8
        %s287 = smul.u32 %s286, 128
        %s288 = sld [smem:[#allocation5 + %s287]]
        %s289 = scalar_lea.vmem %s3, %s288
        %v290 = vld [vmem:[%s289] sm:$0x1]
        %s291 = sadd.s32 %s287, 1
        %s292 = sld [smem:[#allocation5 + %s291]]
        %s293 = sadd.s32 %s292, 16
        %s294 = scalar_lea.vmem %s3, %s293
        %v295 = vld [vmem:[%s294] sm:$0x1]
        %v296 = vadd.f32 %v290, %v295
        %s297 = sadd.s32 %s287, 2
        %s298 = sld [smem:[#allocation5 + %s297]]
        %s299 = sadd.s32 %s298, 32
        %s300 = scalar_lea.vmem %s3, %s299
        %v301 = vld [vmem:[%s300] sm:$0x1]
        %v302 = vadd.f32 %v296, %v301
        %s303 = sadd.s32 %s287, 3
        %s304 = sld [smem:[#allocation5 + %s303]]
        %s305 = sadd.s32 %s304, 48
        %s306 = scalar_lea.vmem %s3, %s305
        %v307 = vld [vmem:[%s306] sm:$0x1]
        %v308 = vadd.f32 %v302, %v307
        %s309 = sadd.s32 %s287, 4
        %s310 = sld [smem:[#allocation5 + %s309]]
        %s311 = sadd.s32 %s310, 64
        %s312 = scalar_lea.vmem %s3, %s311
        %v313 = vld [vmem:[%s312] sm:$0x1]
        %v314 = vadd.f32 %v308, %v313
        %vm315 = vcmask 253952
        %316 = vst.msk [vmem:[#allocation2] sm:$0x1] %vm315, %v314
        %s317 = sadd.s32 %s286, 1
        %s318 = smul.u32 %s317, 128
        %s319 = sld [smem:[#allocation5 + %s318]]
        %s320 = scalar_lea.vmem %s3, %s319
        %v321 = vld [vmem:[%s320] sm:$0x1]
        %s322 = sadd.s32 %s318, 1
        %s323 = sld [smem:[#allocation5 + %s322]]
        %s324 = sadd.s32 %s323, 16
        %s325 = scalar_lea.vmem %s3, %s324
        %v326 = vld [vmem:[%s325] sm:$0x1]
        %v327 = vadd.f32 %v321, %v326
        %s328 = sadd.s32 %s318, 2
        %s329 = sld [smem:[#allocation5 + %s328]]
        %s330 = sadd.s32 %s329, 32
        %s331 = scalar_lea.vmem %s3, %s330
        %v332 = vld [vmem:[%s331] sm:$0x1]
        %v333 = vadd.f32 %v327, %v332
        %s334 = sadd.s32 %s318, 3
        %s335 = sld [smem:[#allocation5 + %s334]]
        %s336 = sadd.s32 %s335, 48
        %s337 = scalar_lea.vmem %s3, %s336
        %v338 = vld [vmem:[%s337] sm:$0x1]
        %v339 = vadd.f32 %v333, %v338
        %s340 = sadd.s32 %s318, 4
        %s341 = sld [smem:[#allocation5 + %s340]]
        %s342 = sadd.s32 %s341, 64
        %s343 = scalar_lea.vmem %s3, %s342
        %v344 = vld [vmem:[%s343] sm:$0x1]
        %v345 = vadd.f32 %v339, %v344
        %346 = vst.msk [vmem:[#allocation2 + $0x1] sm:$0x1] %vm315, %v345
        %s347 = sadd.s32 %s286, 2
        %s348 = smul.u32 %s347, 128
        %s349 = sld [smem:[#allocation5 + %s348]]
        %s350 = scalar_lea.vmem %s3, %s349
        %v351 = vld [vmem:[%s350] sm:$0x1]
        %s352 = sadd.s32 %s348, 1
        %s353 = sld [smem:[#allocation5 + %s352]]
        %s354 = sadd.s32 %s353, 16
        %s355 = scalar_lea.vmem %s3, %s354
        %v356 = vld [vmem:[%s355] sm:$0x1]
        %v357 = vadd.f32 %v351, %v356
        %s358 = sadd.s32 %s348, 2
        %s359 = sld [smem:[#allocation5 + %s358]]
        %s360 = sadd.s32 %s359, 32
        %s361 = scalar_lea.vmem %s3, %s360
        %v362 = vld [vmem:[%s361] sm:$0x1]
        %v363 = vadd.f32 %v357, %v362
        %s364 = sadd.s32 %s348, 3
        %s365 = sld [smem:[#allocation5 + %s364]]
        %s366 = sadd.s32 %s365, 48
        %s367 = scalar_lea.vmem %s3, %s366
        %v368 = vld [vmem:[%s367] sm:$0x1]
        %v369 = vadd.f32 %v363, %v368
        %s370 = sadd.s32 %s348, 4
        %s371 = sld [smem:[#allocation5 + %s370]]
        %s372 = sadd.s32 %s371, 64
        %s373 = scalar_lea.vmem %s3, %s372
        %v374 = vld [vmem:[%s373] sm:$0x1]
        %v375 = vadd.f32 %v369, %v374
        %376 = vst.msk [vmem:[#allocation2 + $0x2] sm:$0x1] %vm315, %v375
        %s377 = sadd.s32 %s286, 3
        %s378 = smul.u32 %s377, 128
        %s379 = sld [smem:[#allocation5 + %s378]]
        %s380 = scalar_lea.vmem %s3, %s379
        %v381 = vld [vmem:[%s380] sm:$0x1]
        %s382 = sadd.s32 %s378, 1
        %s383 = sld [smem:[#allocation5 + %s382]]
        %s384 = sadd.s32 %s383, 16
        %s385 = scalar_lea.vmem %s3, %s384
        %v386 = vld [vmem:[%s385] sm:$0x1]
        %v387 = vadd.f32 %v381, %v386
        %s388 = sadd.s32 %s378, 2
        %s389 = sld [smem:[#allocation5 + %s388]]
        %s390 = sadd.s32 %s389, 32
        %s391 = scalar_lea.vmem %s3, %s390
        %v392 = vld [vmem:[%s391] sm:$0x1]
        %v393 = vadd.f32 %v387, %v392
        %s394 = sadd.s32 %s378, 3
        %s395 = sld [smem:[#allocation5 + %s394]]
        %s396 = sadd.s32 %s395, 48
        %s397 = scalar_lea.vmem %s3, %s396
        %v398 = vld [vmem:[%s397] sm:$0x1]
        %v399 = vadd.f32 %v393, %v398
        %s400 = sadd.s32 %s378, 4
        %s401 = sld [smem:[#allocation5 + %s400]]
        %s402 = sadd.s32 %s401, 64
        %s403 = scalar_lea.vmem %s3, %s402
        %v404 = vld [vmem:[%s403] sm:$0x1]
        %v405 = vadd.f32 %v399, %v404
        %406 = vst.msk [vmem:[#allocation2 + $0x3] sm:$0x1] %vm315, %v405
        %s407 = sadd.s32 %s286, 4
        %s408 = smul.u32 %s407, 128
        %s409 = sld [smem:[#allocation5 + %s408]]
        %s410 = scalar_lea.vmem %s3, %s409
        %v411 = vld [vmem:[%s410] sm:$0x1]
        %s412 = sadd.s32 %s408, 1
        %s413 = sld [smem:[#allocation5 + %s412]]
        %s414 = sadd.s32 %s413, 16
        %s415 = scalar_lea.vmem %s3, %s414
        %v416 = vld [vmem:[%s415] sm:$0x1]
        %v417 = vadd.f32 %v411, %v416
        %s418 = sadd.s32 %s408, 2
        %s419 = sld [smem:[#allocation5 + %s418]]
        %s420 = sadd.s32 %s419, 32
        %s421 = scalar_lea.vmem %s3, %s420
        %v422 = vld [vmem:[%s421] sm:$0x1]
        %v423 = vadd.f32 %v417, %v422
        %s424 = sadd.s32 %s408, 3
        %s425 = sld [smem:[#allocation5 + %s424]]
        %s426 = sadd.s32 %s425, 48
        %s427 = scalar_lea.vmem %s3, %s426
        %v428 = vld [vmem:[%s427] sm:$0x1]
        %v429 = vadd.f32 %v423, %v428
        %s430 = sadd.s32 %s408, 4
        %s431 = sld [smem:[#allocation5 + %s430]]
        %s432 = sadd.s32 %s431, 64
        %s433 = scalar_lea.vmem %s3, %s432
        %v434 = vld [vmem:[%s433] sm:$0x1]
        %v435 = vadd.f32 %v429, %v434
        %436 = vst.msk [vmem:[#allocation2 + $0x4] sm:$0x1] %vm315, %v435
        %s437 = sadd.s32 %s286, 5
        %s438 = smul.u32 %s437, 128
        %s439 = sld [smem:[#allocation5 + %s438]]
        %s440 = scalar_lea.vmem %s3, %s439
        %v441 = vld [vmem:[%s440] sm:$0x1]
        %s442 = sadd.s32 %s438, 1
        %s443 = sld [smem:[#allocation5 + %s442]]
        %s444 = sadd.s32 %s443, 16
        %s445 = scalar_lea.vmem %s3, %s444
        %v446 = vld [vmem:[%s445] sm:$0x1]
        %v447 = vadd.f32 %v441, %v446
        %s448 = sadd.s32 %s438, 2
        %s449 = sld [smem:[#allocation5 + %s448]]
        %s450 = sadd.s32 %s449, 32
        %s451 = scalar_lea.vmem %s3, %s450
        %v452 = vld [vmem:[%s451] sm:$0x1]
        %v453 = vadd.f32 %v447, %v452
        %s454 = sadd.s32 %s438, 3
        %s455 = sld [smem:[#allocation5 + %s454]]
        %s456 = sadd.s32 %s455, 48
        %s457 = scalar_lea.vmem %s3, %s456
        %v458 = vld [vmem:[%s457] sm:$0x1]
        %v459 = vadd.f32 %v453, %v458
        %s460 = sadd.s32 %s438, 4
        %s461 = sld [smem:[#allocation5 + %s460]]
        %s462 = sadd.s32 %s461, 64
        %s463 = scalar_lea.vmem %s3, %s462
        %v464 = vld [vmem:[%s463] sm:$0x1]
        %v465 = vadd.f32 %v459, %v464
        %466 = vst.msk [vmem:[#allocation2 + $0x5] sm:$0x1] %vm315, %v465
        %s467 = sadd.s32 %s286, 6
        %s468 = smul.u32 %s467, 128
        %s469 = sld [smem:[#allocation5 + %s468]]
        %s470 = scalar_lea.vmem %s3, %s469
        %v471 = vld [vmem:[%s470] sm:$0x1]
        %s472 = sadd.s32 %s468, 1
        %s473 = sld [smem:[#allocation5 + %s472]]
        %s474 = sadd.s32 %s473, 16
        %s475 = scalar_lea.vmem %s3, %s474
        %v476 = vld [vmem:[%s475] sm:$0x1]
        %v477 = vadd.f32 %v471, %v476
        %s478 = sadd.s32 %s468, 2
        %s479 = sld [smem:[#allocation5 + %s478]]
        %s480 = sadd.s32 %s479, 32
        %s481 = scalar_lea.vmem %s3, %s480
        %v482 = vld [vmem:[%s481] sm:$0x1]
        %v483 = vadd.f32 %v477, %v482
        %s484 = sadd.s32 %s468, 3
        %s485 = sld [smem:[#allocation5 + %s484]]
        %s486 = sadd.s32 %s485, 48
        %s487 = scalar_lea.vmem %s3, %s486
        %v488 = vld [vmem:[%s487] sm:$0x1]
        %v489 = vadd.f32 %v483, %v488
        %s490 = sadd.s32 %s468, 4
        %s491 = sld [smem:[#allocation5 + %s490]]
        %s492 = sadd.s32 %s491, 64
        %s493 = scalar_lea.vmem %s3, %s492
        %v494 = vld [vmem:[%s493] sm:$0x1]
        %v495 = vadd.f32 %v489, %v494
        %496 = vst.msk [vmem:[#allocation2 + $0x6] sm:$0x1] %vm315, %v495
        %s497 = sadd.s32 %s286, 7
        %s498 = smul.u32 %s497, 128
        %s499 = sld [smem:[#allocation5 + %s498]]
        %s500 = scalar_lea.vmem %s3, %s499
        %v501 = vld [vmem:[%s500] sm:$0x1]
        %s502 = sadd.s32 %s498, 1
        %s503 = sld [smem:[#allocation5 + %s502]]
        %s504 = sadd.s32 %s503, 16
        %s505 = scalar_lea.vmem %s3, %s504
        %v506 = vld [vmem:[%s505] sm:$0x1]
        %v507 = vadd.f32 %v501, %v506
        %s508 = sadd.s32 %s498, 2
        %s509 = sld [smem:[#allocation5 + %s508]]
        %s510 = sadd.s32 %s509, 32
        %s511 = scalar_lea.vmem %s3, %s510
        %v512 = vld [vmem:[%s511] sm:$0x1]
        %v513 = vadd.f32 %v507, %v512
        %s514 = sadd.s32 %s498, 3
        %s515 = sld [smem:[#allocation5 + %s514]]
        %s516 = sadd.s32 %s515, 48
        %s517 = scalar_lea.vmem %s3, %s516
        %v518 = vld [vmem:[%s517] sm:$0x1]
        %v519 = vadd.f32 %v513, %v518
        %s520 = sadd.s32 %s498, 4
        %s521 = sld [smem:[#allocation5 + %s520]]
        %s522 = sadd.s32 %s521, 64
        %s523 = scalar_lea.vmem %s3, %s522
        %v524 = vld [vmem:[%s523] sm:$0x1]
        %v525 = vadd.f32 %v519, %v524
        %526 = vst.msk [vmem:[#allocation2 + $0x7] sm:$0x1] %vm315, %v525
        %v527 = vld [vmem:[#allocation2] sm:$0xff]
        %v528 = vmax.f32 %v527, 0.0
        %v529 = vld [vmem:[%s4] sm:$0xff]
        %v530 = vld [vmem:[%s4 + $0x8] sm:$0xff]
        %v531 = vld [vmem:[%s4 + $0x10] sm:$0xff]
        %v532 = vld [vmem:[%s4 + $0x18] sm:$0xff]
        %v533 = vld [vmem:[%s5] sm:$0x1]
        %v535 = vlaneseq
        %v536 = vshrl.u32 %v535, 7
        %v537 = vsub.s32 0, %v536
        %v538 = vrot.slane %v533, %v537
        %vm540 = vcmask 261120
        %v542 = vsel %vm540, %v528, 0
        %544 = vmatprep.subr.mxu0 0.0
        %545 = vmatpush1.msra.mxu0 %v529
        %546 = vmatprep.subr.mxu0 0.0
        %547 = vmatpush1.msra.mxu0 %v530
        %548 = vmatprep.subr.mxu0 0.0
        %549 = vmatpush1.msra.mxu0 %v531
        %550 = vmatprep.subr.mxu0 0.0
        %551 = vmatpush1.msra.mxu0 %v532
        %552 = vmatprep.subr.mxu0 0.0
        %553 = vmatpush1.msra.mxu0 0.0
        %554 = vmatprep.subr.mxu0 0.0
        %555 = vmatpush1.msra.mxu0 0.0
        %556 = vmatprep.subr.mxu0 0.0
        %557 = vmatpush1.msra.mxu0 0.0
        %558 = vmatprep.subr.mxu0 0.0
        %559 = vmatpush1.msra.mxu0 0.0
        %560 = vmatprep.subr.mxu0 0.0
        %561 = vmatpush1.msra.mxu0 0.0
        %562 = vmatprep.subr.mxu0 0.0
        %563 = vmatpush1.msra.mxu0 0.0
        %564 = vmatprep.subr.mxu0 0.0
        %565 = vmatpush1.msra.mxu0 0.0
        %566 = vmatprep.subr.mxu0 0.0
        %567 = vmatpush1.msra.mxu0 0.0
        %568 = vmatprep.subr.mxu0 0.0
        %569 = vmatpush1.msra.mxu0 0.0
        %570 = vmatprep.subr.mxu0 0.0
        %571 = vmatpush1.msra.mxu0 0.0
        %572 = vmatprep.subr.mxu0 0.0
        %573 = vmatpush1.msra.mxu0 0.0
        %574 = vmatprep.subr.mxu0 0.0
        %575 = vmatpush1.msra.mxu0 0.0
        %576 = vmatprep.subr.mxu0 0.0
        %577 = vmatpush1.msra.mxu0 0.0
        %578 = vmatprep.subr.mxu0 0.0
        %579 = vmatpush1.msra.mxu0 0.0
        %580 = vmatprep.subr.mxu0 0.0
        %581 = vmatpush1.msra.mxu0 0.0
        %582 = vmatprep.subr.mxu0 0.0
        %583 = vmatpush1.msra.mxu0 0.0
        %584 = vmatprep.subr.mxu0 0.0
        %585 = vmatpush1.msra.mxu0 0.0
        %586 = vmatprep.subr.mxu0 0.0
        %587 = vmatpush1.msra.mxu0 0.0
        %588 = vmatprep.subr.mxu0 0.0
        %589 = vmatpush1.msra.mxu0 0.0
        %590 = vmatprep.subr.mxu0 0.0
        %591 = vmatpush1.msra.mxu0 0.0
        %592 = vmatprep.subr.mxu0 0.0
        %593 = vmatpush1.msra.mxu0 0.0
        %594 = vmatprep.subr.mxu0 0.0
        %595 = vmatpush1.msra.mxu0 0.0
        %596 = vmatprep.subr.mxu0 0.0
        %597 = vmatpush1.msra.mxu0 0.0
        %598 = vmatprep.subr.mxu0 0.0
        %599 = vmatpush1.msra.mxu0 0.0
        %600 = vmatprep.subr.mxu0 0.0
        %601 = vmatpush1.msra.mxu0 0.0
        %602 = vmatprep.subr.mxu0 0.0
        %603 = vmatpush1.msra.mxu0 0.0
        %604 = vmatprep.subr.mxu0 0.0
        %605 = vmatpush1.msra.mxu0 0.0
        %606 = vmatprep.subr.mxu0 0.0
        %607 = vmatpush1.msra.mxu0 0.0
        %608 = vmatprep.mubr.f32.mxu0 0.0
        %609 = vmatmul.mubr.f32.gmra.mrb[0].mxu0 %v542
        %v610 = vpop.f32.mrb[0].mxu0
        %v611 = vadd.f32 %v538, %v610
        %v612 = vpop.f32.mrb[0].mxu0
        %613 = vdwg.mxu0
        %v614 = vld [vmem:[%s285] sm:$0xff]
        %v615 = vlaneseq
        %v616 = vshrl.u32 %v615, 7
        %v617 = vadd.s32 %v616, 8
        %v618 = vlaneseq
        %v619 = vshrl.u32 %v618, 7
        %v620 = vsub.s32 0, %v619
        %v621 = vrot.slane %v614, %v620
        %v622 = vlaneseq
        %v623 = vshrl.u32 %v622, 7
        %v624 = vsub.s32 1, %v623
        %v625 = vrot.slane %v614, %v624
        %v626 = vlaneseq
        %v627 = vshrl.u32 %v626, 7
        %v628 = vsub.s32 2, %v627
        %v629 = vrot.slane %v614, %v628
        %v630 = vlaneseq
        %v631 = vshrl.u32 %v630, 7
        %v632 = vsub.s32 3, %v631
        %v633 = vrot.slane %v614, %v632
        %v634 = vlaneseq
        %v635 = vshrl.u32 %v634, 7
        %v636 = vsub.s32 4, %v635
        %v637 = vrot.slane %v614, %v636
        %v638 = vlaneseq
        %v639 = vshrl.u32 %v638, 7
        %v640 = vsub.s32 5, %v639
        %v641 = vrot.slane %v614, %v640
        %v642 = vlaneseq
        %v643 = vshrl.u32 %v642, 7
        %v644 = vsub.s32 6, %v643
        %v645 = vrot.slane %v614, %v644
        %v646 = vlaneseq
        %v647 = vshrl.u32 %v646, 7
        %v648 = vsub.s32 7, %v647
        %v649 = vrot.slane %v614, %v648
        %vm650 = vcmp.eq.s32.totalorder %v616, %v621
        %vm651 = vcmp.eq.s32.totalorder %v616, %v625
        %vm652 = vcmp.eq.s32.totalorder %v616, %v629
        %vm653 = vcmp.eq.s32.totalorder %v616, %v633
        %vm654 = vcmp.eq.s32.totalorder %v616, %v637
        %vm655 = vcmp.eq.s32.totalorder %v616, %v641
        %vm656 = vcmp.eq.s32.totalorder %v616, %v645
        %vm657 = vcmp.eq.s32.totalorder %v616, %v649
        %vm658 = vcmp.eq.s32.totalorder %v617, %v621
        %vm659 = vcmp.eq.s32.totalorder %v617, %v625
        %vm660 = vcmp.eq.s32.totalorder %v617, %v629
        %vm661 = vcmp.eq.s32.totalorder %v617, %v633
        %vm662 = vcmp.eq.s32.totalorder %v617, %v637
        %vm663 = vcmp.eq.s32.totalorder %v617, %v641
        %vm664 = vcmp.eq.s32.totalorder %v617, %v645
        %vm665 = vcmp.eq.s32.totalorder %v617, %v649
        %v666 = vsel %vm650, 1, 0
        %v667 = vsel %vm651, 1, 0
        %v668 = vsel %vm652, 1, 0
        %v669 = vsel %vm653, 1, 0
        %v670 = vsel %vm654, 1, 0
        %v671 = vsel %vm655, 1, 0
        %v672 = vsel %vm656, 1, 0
        %v673 = vsel %vm657, 1, 0
        %v674 = vsel %vm658, 1, 0
        %v675 = vsel %vm659, 1, 0
        %v676 = vsel %vm660, 1, 0
        %v677 = vsel %vm661, 1, 0
        %v678 = vsel %vm662, 1, 0
        %v679 = vsel %vm663, 1, 0
        %v680 = vsel %vm664, 1, 0
        %v681 = vsel %vm665, 1, 0
        %v682 = vcvt.s32.f32 %v666
        %v683 = vcvt.s32.f32 %v667
        %v684 = vcvt.s32.f32 %v668
        %v685 = vcvt.s32.f32 %v669
        %v686 = vcvt.s32.f32 %v670
        %v687 = vcvt.s32.f32 %v671
        %v688 = vcvt.s32.f32 %v672
        %v689 = vcvt.s32.f32 %v673
        %v690 = vcvt.s32.f32 %v674
        %v691 = vcvt.s32.f32 %v675
        %v692 = vcvt.s32.f32 %v676
        %v693 = vcvt.s32.f32 %v677
        %v694 = vcvt.s32.f32 %v678
        %v695 = vcvt.s32.f32 %v679
        %v696 = vcvt.s32.f32 %v680
        %v697 = vcvt.s32.f32 %v681
        %v698 = vld [vmem:[%s6] sm:$0xff]
        %v699 = vld [vmem:[%s6 + $0x8] sm:$0xff]
        %v700 = vld [vmem:[%s6 + $0x10] sm:$0xff]
        %v701 = vld [vmem:[%s6 + $0x18] sm:$0xff]
        %vm702 = vcmask 130048
        %v704 = vsel %vm702, %v698, 0
        %v707 = vsel %vm702, %v699, 0
        %v710 = vsel %vm702, %v700, 0
        %v713 = vsel %vm702, %v701, 0
        %715 = vmatprep.subr.mxu0 %v683
        %716 = vmatpush1.msra.mxu0 %v682
        %717 = vmatprep.subr.mxu0 %v691
        %718 = vmatpush1.msra.mxu0 %v690
        %719 = vmatprep.subr.mxu0 0.0
        %720 = vmatpush1.msra.mxu0 0.0
        %721 = vmatprep.subr.mxu0 0.0
        %722 = vmatpush1.msra.mxu0 0.0
        %723 = vmatprep.subr.mxu0 0.0
        %724 = vmatpush1.msra.mxu0 0.0
        %725 = vmatprep.subr.mxu0 0.0
        %726 = vmatpush1.msra.mxu0 0.0
        %727 = vmatprep.subr.mxu0 0.0
        %728 = vmatpush1.msra.mxu0 0.0
        %729 = vmatprep.subr.mxu0 0.0
        %730 = vmatpush1.msra.mxu0 0.0
        %731 = vmatprep.subr.mxu0 0.0
        %732 = vmatpush1.msra.mxu0 0.0
        %733 = vmatprep.subr.mxu0 0.0
        %734 = vmatpush1.msra.mxu0 0.0
        %735 = vmatprep.subr.mxu0 0.0
        %736 = vmatpush1.msra.mxu0 0.0
        %737 = vmatprep.subr.mxu0 0.0
        %738 = vmatpush1.msra.mxu0 0.0
        %739 = vmatprep.subr.mxu0 0.0
        %740 = vmatpush1.msra.mxu0 0.0
        %741 = vmatprep.subr.mxu0 0.0
        %742 = vmatpush1.msra.mxu0 0.0
        %743 = vmatprep.subr.mxu0 0.0
        %744 = vmatpush1.msra.mxu0 0.0
        %745 = vmatprep.subr.mxu0 0.0
        %746 = vmatpush1.msra.mxu0 0.0
        %747 = vmatprep.subr.mxu0 0.0
        %748 = vmatpush1.msra.mxu0 0.0
        %749 = vmatprep.subr.mxu0 0.0
        %750 = vmatpush1.msra.mxu0 0.0
        %751 = vmatprep.subr.mxu0 0.0
        %752 = vmatpush1.msra.mxu0 0.0
        %753 = vmatprep.subr.mxu0 0.0
        %754 = vmatpush1.msra.mxu0 0.0
        %755 = vmatprep.subr.mxu0 0.0
        %756 = vmatpush1.msra.mxu0 0.0
        %757 = vmatprep.subr.mxu0 0.0
        %758 = vmatpush1.msra.mxu0 0.0
        %759 = vmatprep.subr.mxu0 0.0
        %760 = vmatpush1.msra.mxu0 0.0
        %761 = vmatprep.subr.mxu0 0.0
        %762 = vmatpush1.msra.mxu0 0.0
        %763 = vmatprep.subr.mxu0 0.0
        %764 = vmatpush1.msra.mxu0 0.0
        %765 = vmatprep.subr.mxu0 0.0
        %766 = vmatpush1.msra.mxu0 0.0
        %767 = vmatprep.subr.mxu0 0.0
        %768 = vmatpush1.msra.mxu0 0.0
        %769 = vmatprep.subr.mxu0 0.0
        %770 = vmatpush1.msra.mxu0 0.0
        %771 = vmatprep.subr.mxu0 0.0
        %772 = vmatpush1.msra.mxu0 0.0
        %773 = vmatprep.subr.mxu0 0.0
        %774 = vmatpush1.msra.mxu0 0.0
        %775 = vmatprep.subr.mxu0 0.0
        %776 = vmatpush1.msra.mxu0 0.0
        %777 = vmatprep.subr.mxu0 0.0
        %778 = vmatpush1.msra.mxu0 0.0
        %779 = vmatprep.mubr.f32.mxu0 0.0
        %780 = vmatmul.mubr.f32.gmra.mrb[0].mxu0 %v704
        %v781 = vpop.f32.mrb[0].mxu0
        %v782 = vadd.f32 0.0, %v781
        %v783 = vpop.f32.mrb[0].mxu0
        %v784 = vadd.f32 0.0, %v783
        %785 = vmatprep.mubr.f32.mxu0 0.0
        %786 = vmatmul.mubr.f32.gmra.mrb[0].mxu0 %v707
        %v787 = vpop.f32.mrb[0].mxu0
        %v788 = vadd.f32 0.0, %v787
        %v789 = vpop.f32.mrb[0].mxu0
        %v790 = vadd.f32 0.0, %v789
        %791 = vmatprep.mubr.f32.mxu0 0.0
        %792 = vmatmul.mubr.f32.gmra.mrb[0].mxu0 %v710
        %v793 = vpop.f32.mrb[0].mxu0
        %v794 = vadd.f32 0.0, %v793
        %v795 = vpop.f32.mrb[0].mxu0
        %v796 = vadd.f32 0.0, %v795
        %797 = vmatprep.mubr.f32.mxu0 0.0
        %798 = vmatmul.mubr.f32.gmra.mrb[0].mxu0 %v713
        %v799 = vpop.f32.mrb[0].mxu0
        %v800 = vadd.f32 0.0, %v799
        %v801 = vpop.f32.mrb[0].mxu0
        %v802 = vadd.f32 0.0, %v801
        %803 = vdwg.mxu0
        %804 = vmatprep.subr.mxu0 %v685
        %805 = vmatpush1.msra.mxu0 %v684
        %806 = vmatprep.subr.mxu0 %v693
        %807 = vmatpush1.msra.mxu0 %v692
        %808 = vmatprep.subr.mxu0 0.0
        %809 = vmatpush1.msra.mxu0 0.0
        %810 = vmatprep.subr.mxu0 0.0
        %811 = vmatpush1.msra.mxu0 0.0
        %812 = vmatprep.subr.mxu0 0.0
        %813 = vmatpush1.msra.mxu0 0.0
        %814 = vmatprep.subr.mxu0 0.0
        %815 = vmatpush1.msra.mxu0 0.0
        %816 = vmatprep.subr.mxu0 0.0
        %817 = vmatpush1.msra.mxu0 0.0
        %818 = vmatprep.subr.mxu0 0.0
        %819 = vmatpush1.msra.mxu0 0.0
        %820 = vmatprep.subr.mxu0 0.0
        %821 = vmatpush1.msra.mxu0 0.0
        %822 = vmatprep.subr.mxu0 0.0
        %823 = vmatpush1.msra.mxu0 0.0
        %824 = vmatprep.subr.mxu0 0.0
        %825 = vmatpush1.msra.mxu0 0.0
        %826 = vmatprep.subr.mxu0 0.0
        %827 = vmatpush1.msra.mxu0 0.0
        %828 = vmatprep.subr.mxu0 0.0
        %829 = vmatpush1.msra.mxu0 0.0
        %830 = vmatprep.subr.mxu0 0.0
        %831 = vmatpush1.msra.mxu0 0.0
        %832 = vmatprep.subr.mxu0 0.0
        %833 = vmatpush1.msra.mxu0 0.0
        %834 = vmatprep.subr.mxu0 0.0
        %835 = vmatpush1.msra.mxu0 0.0
        %836 = vmatprep.subr.mxu0 0.0
        %837 = vmatpush1.msra.mxu0 0.0
        %838 = vmatprep.subr.mxu0 0.0
        %839 = vmatpush1.msra.mxu0 0.0
        %840 = vmatprep.subr.mxu0 0.0
        %841 = vmatpush1.msra.mxu0 0.0
        %842 = vmatprep.subr.mxu0 0.0
        %843 = vmatpush1.msra.mxu0 0.0
        %844 = vmatprep.subr.mxu0 0.0
        %845 = vmatpush1.msra.mxu0 0.0
        %846 = vmatprep.subr.mxu0 0.0
        %847 = vmatpush1.msra.mxu0 0.0
        %848 = vmatprep.subr.mxu0 0.0
        %849 = vmatpush1.msra.mxu0 0.0
        %850 = vmatprep.subr.mxu0 0.0
        %851 = vmatpush1.msra.mxu0 0.0
        %852 = vmatprep.subr.mxu0 0.0
        %853 = vmatpush1.msra.mxu0 0.0
        %854 = vmatprep.subr.mxu0 0.0
        %855 = vmatpush1.msra.mxu0 0.0
        %856 = vmatprep.subr.mxu0 0.0
        %857 = vmatpush1.msra.mxu0 0.0
        %858 = vmatprep.subr.mxu0 0.0
        %859 = vmatpush1.msra.mxu0 0.0
        %860 = vmatprep.subr.mxu0 0.0
        %861 = vmatpush1.msra.mxu0 0.0
        %862 = vmatprep.subr.mxu0 0.0
        %863 = vmatpush1.msra.mxu0 0.0
        %864 = vmatprep.subr.mxu0 0.0
        %865 = vmatpush1.msra.mxu0 0.0
        %866 = vmatprep.subr.mxu0 0.0
        %867 = vmatpush1.msra.mxu0 0.0
        %868 = vmatprep.mubr.f32.mxu0 0.0
        %869 = vmatmul.mubr.f32.gmra.mrb[0].mxu0 %v704
        %v870 = vpop.f32.mrb[0].mxu0
        %v871 = vadd.f32 0.0, %v870
        %v872 = vpop.f32.mrb[0].mxu0
        %v873 = vadd.f32 0.0, %v872
        %874 = vmatprep.mubr.f32.mxu0 0.0
        %875 = vmatmul.mubr.f32.gmra.mrb[0].mxu0 %v707
        %v876 = vpop.f32.mrb[0].mxu0
        %v877 = vadd.f32 0.0, %v876
        %v878 = vpop.f32.mrb[0].mxu0
        %v879 = vadd.f32 0.0, %v878
        %880 = vmatprep.mubr.f32.mxu0 0.0
        %881 = vmatmul.mubr.f32.gmra.mrb[0].mxu0 %v710
        %v882 = vpop.f32.mrb[0].mxu0
        %v883 = vadd.f32 0.0, %v882
        %v884 = vpop.f32.mrb[0].mxu0
        %v885 = vadd.f32 0.0, %v884
        %886 = vmatprep.mubr.f32.mxu0 0.0
        %887 = vmatmul.mubr.f32.gmra.mrb[0].mxu0 %v713
        %v888 = vpop.f32.mrb[0].mxu0
        %v889 = vadd.f32 0.0, %v888
        %v890 = vpop.f32.mrb[0].mxu0
        %v891 = vadd.f32 0.0, %v890
        %892 = vdwg.mxu0
        %893 = vmatprep.subr.mxu0 %v687
        %894 = vmatpush1.msra.mxu0 %v686
        %895 = vmatprep.subr.mxu0 %v695
        %896 = vmatpush1.msra.mxu0 %v694
        %897 = vmatprep.subr.mxu0 0.0
        %898 = vmatpush1.msra.mxu0 0.0
        %899 = vmatprep.subr.mxu0 0.0
        %900 = vmatpush1.msra.mxu0 0.0
        %901 = vmatprep.subr.mxu0 0.0
        %902 = vmatpush1.msra.mxu0 0.0
        %903 = vmatprep.subr.mxu0 0.0
        %904 = vmatpush1.msra.mxu0 0.0
        %905 = vmatprep.subr.mxu0 0.0
        %906 = vmatpush1.msra.mxu0 0.0
        %907 = vmatprep.subr.mxu0 0.0
        %908 = vmatpush1.msra.mxu0 0.0
        %909 = vmatprep.subr.mxu0 0.0
        %910 = vmatpush1.msra.mxu0 0.0
        %911 = vmatprep.subr.mxu0 0.0
        %912 = vmatpush1.msra.mxu0 0.0
        %913 = vmatprep.subr.mxu0 0.0
        %914 = vmatpush1.msra.mxu0 0.0
        %915 = vmatprep.subr.mxu0 0.0
        %916 = vmatpush1.msra.mxu0 0.0
        %917 = vmatprep.subr.mxu0 0.0
        %918 = vmatpush1.msra.mxu0 0.0
        %919 = vmatprep.subr.mxu0 0.0
        %920 = vmatpush1.msra.mxu0 0.0
        %921 = vmatprep.subr.mxu0 0.0
        %922 = vmatpush1.msra.mxu0 0.0
        %923 = vmatprep.subr.mxu0 0.0
        %924 = vmatpush1.msra.mxu0 0.0
        %925 = vmatprep.subr.mxu0 0.0
        %926 = vmatpush1.msra.mxu0 0.0
        %927 = vmatprep.subr.mxu0 0.0
        %928 = vmatpush1.msra.mxu0 0.0
        %929 = vmatprep.subr.mxu0 0.0
        %930 = vmatpush1.msra.mxu0 0.0
        %931 = vmatprep.subr.mxu0 0.0
        %932 = vmatpush1.msra.mxu0 0.0
        %933 = vmatprep.subr.mxu0 0.0
        %934 = vmatpush1.msra.mxu0 0.0
        %935 = vmatprep.subr.mxu0 0.0
        %936 = vmatpush1.msra.mxu0 0.0
        %937 = vmatprep.subr.mxu0 0.0
        %938 = vmatpush1.msra.mxu0 0.0
        %939 = vmatprep.subr.mxu0 0.0
        %940 = vmatpush1.msra.mxu0 0.0
        %941 = vmatprep.subr.mxu0 0.0
        %942 = vmatpush1.msra.mxu0 0.0
        %943 = vmatprep.subr.mxu0 0.0
        %944 = vmatpush1.msra.mxu0 0.0
        %945 = vmatprep.subr.mxu0 0.0
        %946 = vmatpush1.msra.mxu0 0.0
        %947 = vmatprep.subr.mxu0 0.0
        %948 = vmatpush1.msra.mxu0 0.0
        %949 = vmatprep.subr.mxu0 0.0
        %950 = vmatpush1.msra.mxu0 0.0
        %951 = vmatprep.subr.mxu0 0.0
        %952 = vmatpush1.msra.mxu0 0.0
        %953 = vmatprep.subr.mxu0 0.0
        %954 = vmatpush1.msra.mxu0 0.0
        %955 = vmatprep.subr.mxu0 0.0
        %956 = vmatpush1.msra.mxu0 0.0
        %957 = vmatprep.mubr.f32.mxu0 0.0
        %958 = vmatmul.mubr.f32.gmra.mrb[0].mxu0 %v704
        %v959 = vpop.f32.mrb[0].mxu0
        %v960 = vadd.f32 0.0, %v959
        %v961 = vpop.f32.mrb[0].mxu0
        %v962 = vadd.f32 0.0, %v961
        %963 = vmatprep.mubr.f32.mxu0 0.0
        %964 = vmatmul.mubr.f32.gmra.mrb[0].mxu0 %v707
        %v965 = vpop.f32.mrb[0].mxu0
        %v966 = vadd.f32 0.0, %v965
        %v967 = vpop.f32.mrb[0].mxu0
        %v968 = vadd.f32 0.0, %v967
        %969 = vmatprep.mubr.f32.mxu0 0.0
        %970 = vmatmul.mubr.f32.gmra.mrb[0].mxu0 %v710
        %v971 = vpop.f32.mrb[0].mxu0
        %v972 = vadd.f32 0.0, %v971
        %v973 = vpop.f32.mrb[0].mxu0
        %v974 = vadd.f32 0.0, %v973
        %975 = vmatprep.mubr.f32.mxu0 0.0
        %976 = vmatmul.mubr.f32.gmra.mrb[0].mxu0 %v713
        %v977 = vpop.f32.mrb[0].mxu0
        %v978 = vadd.f32 0.0, %v977
        %v979 = vpop.f32.mrb[0].mxu0
        %v980 = vadd.f32 0.0, %v979
        %981 = vdwg.mxu0
        %982 = vmatprep.subr.mxu0 %v689
        %983 = vmatpush1.msra.mxu0 %v688
        %984 = vmatprep.subr.mxu0 %v697
        %985 = vmatpush1.msra.mxu0 %v696
        %986 = vmatprep.subr.mxu0 0.0
        %987 = vmatpush1.msra.mxu0 0.0
        %988 = vmatprep.subr.mxu0 0.0
        %989 = vmatpush1.msra.mxu0 0.0
        %990 = vmatprep.subr.mxu0 0.0
        %991 = vmatpush1.msra.mxu0 0.0
        %992 = vmatprep.subr.mxu0 0.0
        %993 = vmatpush1.msra.mxu0 0.0
        %994 = vmatprep.subr.mxu0 0.0
        %995 = vmatpush1.msra.mxu0 0.0
        %996 = vmatprep.subr.mxu0 0.0
        %997 = vmatpush1.msra.mxu0 0.0
        %998 = vmatprep.subr.mxu0 0.0
        %999 = vmatpush1.msra.mxu0 0.0
        %1000 = vmatprep.subr.mxu0 0.0
        %1001 = vmatpush1.msra.mxu0 0.0
        %1002 = vmatprep.subr.mxu0 0.0
        %1003 = vmatpush1.msra.mxu0 0.0
        %1004 = vmatprep.subr.mxu0 0.0
        %1005 = vmatpush1.msra.mxu0 0.0
        %1006 = vmatprep.subr.mxu0 0.0
        %1007 = vmatpush1.msra.mxu0 0.0
        %1008 = vmatprep.subr.mxu0 0.0
        %1009 = vmatpush1.msra.mxu0 0.0
        %1010 = vmatprep.subr.mxu0 0.0
        %1011 = vmatpush1.msra.mxu0 0.0
        %1012 = vmatprep.subr.mxu0 0.0
        %1013 = vmatpush1.msra.mxu0 0.0
        %1014 = vmatprep.subr.mxu0 0.0
        %1015 = vmatpush1.msra.mxu0 0.0
        %1016 = vmatprep.subr.mxu0 0.0
        %1017 = vmatpush1.msra.mxu0 0.0
        %1018 = vmatprep.subr.mxu0 0.0
        %1019 = vmatpush1.msra.mxu0 0.0
        %1020 = vmatprep.subr.mxu0 0.0
        %1021 = vmatpush1.msra.mxu0 0.0
        %1022 = vmatprep.subr.mxu0 0.0
        %1023 = vmatpush1.msra.mxu0 0.0
        %1024 = vmatprep.subr.mxu0 0.0
        %1025 = vmatpush1.msra.mxu0 0.0
        %1026 = vmatprep.subr.mxu0 0.0
        %1027 = vmatpush1.msra.mxu0 0.0
        %1028 = vmatprep.subr.mxu0 0.0
        %1029 = vmatpush1.msra.mxu0 0.0
        %1030 = vmatprep.subr.mxu0 0.0
        %1031 = vmatpush1.msra.mxu0 0.0
        %1032 = vmatprep.subr.mxu0 0.0
        %1033 = vmatpush1.msra.mxu0 0.0
        %1034 = vmatprep.subr.mxu0 0.0
        %1035 = vmatpush1.msra.mxu0 0.0
        %1036 = vmatprep.subr.mxu0 0.0
        %1037 = vmatpush1.msra.mxu0 0.0
        %1038 = vmatprep.subr.mxu0 0.0
        %1039 = vmatpush1.msra.mxu0 0.0
        %1040 = vmatprep.subr.mxu0 0.0
        %1041 = vmatpush1.msra.mxu0 0.0
        %1042 = vmatprep.subr.mxu0 0.0
        %1043 = vmatpush1.msra.mxu0 0.0
        %1044 = vmatprep.subr.mxu0 0.0
        %1045 = vmatpush1.msra.mxu0 0.0
        %1046 = vmatprep.mubr.f32.mxu0 0.0
        %1047 = vmatmul.mubr.f32.gmra.mrb[0].mxu0 %v704
        %v1048 = vpop.f32.mrb[0].mxu0
        %v1049 = vadd.f32 0.0, %v1048
        %v1050 = vpop.f32.mrb[0].mxu0
        %v1051 = vadd.f32 0.0, %v1050
        %1052 = vmatprep.mubr.f32.mxu0 0.0
        %1053 = vmatmul.mubr.f32.gmra.mrb[0].mxu0 %v707
        %v1054 = vpop.f32.mrb[0].mxu0
        %v1055 = vadd.f32 0.0, %v1054
        %v1056 = vpop.f32.mrb[0].mxu0
        %v1057 = vadd.f32 0.0, %v1056
        %1058 = vmatprep.mubr.f32.mxu0 0.0
        %1059 = vmatmul.mubr.f32.gmra.mrb[0].mxu0 %v710
        %v1060 = vpop.f32.mrb[0].mxu0
        %v1061 = vadd.f32 0.0, %v1060
        %v1062 = vpop.f32.mrb[0].mxu0
        %v1063 = vadd.f32 0.0, %v1062
        %1064 = vmatprep.mubr.f32.mxu0 0.0
        %1065 = vmatmul.mubr.f32.gmra.mrb[0].mxu0 %v713
        %v1066 = vpop.f32.mrb[0].mxu0
        %v1067 = vadd.f32 0.0, %v1066
        %v1068 = vpop.f32.mrb[0].mxu0
        %v1069 = vadd.f32 0.0, %v1068
        %1070 = vdwg.mxu0
        %v1071 = vld [vmem:[%s7] sm:$0xff]
        %v1072 = vld [vmem:[%s7 + $0x8] sm:$0xff]
        %v1073 = vld [vmem:[%s7 + $0x10] sm:$0xff]
        %v1074 = vld [vmem:[%s7 + $0x18] sm:$0xff]
        %v1075 = vmax.f32 %v782, 0.0
        %v1076 = vmax.f32 %v784, 0.0
        %v1077 = vmax.f32 %v871, 0.0
        %v1078 = vmax.f32 %v873, 0.0
        %v1079 = vmax.f32 %v960, 0.0
        %v1080 = vmax.f32 %v962, 0.0
        %v1081 = vmax.f32 %v1049, 0.0
        %v1082 = vmax.f32 %v1051, 0.0
        %v1083 = vmax.f32 %v788, 0.0
        %v1084 = vmax.f32 %v790, 0.0
        %v1085 = vmax.f32 %v877, 0.0
        %v1086 = vmax.f32 %v879, 0.0
        %v1087 = vmax.f32 %v966, 0.0
        %v1088 = vmax.f32 %v968, 0.0
        %v1089 = vmax.f32 %v1055, 0.0
        %v1090 = vmax.f32 %v1057, 0.0
        %v1091 = vmax.f32 %v794, 0.0
        %v1092 = vmax.f32 %v796, 0.0
        %v1093 = vmax.f32 %v883, 0.0
        %v1094 = vmax.f32 %v885, 0.0
        %v1095 = vmax.f32 %v972, 0.0
        %v1096 = vmax.f32 %v974, 0.0
        %v1097 = vmax.f32 %v1061, 0.0
        %v1098 = vmax.f32 %v1063, 0.0
        %v1099 = vmax.f32 %v800, 0.0
        %v1100 = vmax.f32 %v802, 0.0
        %v1101 = vmax.f32 %v889, 0.0
        %v1102 = vmax.f32 %v891, 0.0
        %v1103 = vmax.f32 %v978, 0.0
        %v1104 = vmax.f32 %v980, 0.0
        %v1105 = vmax.f32 %v1067, 0.0
        %v1106 = vmax.f32 %v1069, 0.0
        %v1107 = vld [vmem:[%s8] sm:$0xff]
        %v1108 = vld [vmem:[%s8 + $0x8] sm:$0xff]
        %v1109 = vld [vmem:[%s8 + $0x10] sm:$0xff]
        %v1110 = vld [vmem:[%s8 + $0x18] sm:$0xff]
        %1112 = vset.pattern.permute.xlu0 0
        %1113 = vperm.xlu0 %1112, %v1107
        %v1114 = vpop.permute.xlu0 %1113
        %1117 = vset.pattern.permute.xlu0 0
        %1118 = vperm.xlu0 %1117, %v1108
        %v1119 = vpop.permute.xlu0 %1118
        %1122 = vset.pattern.permute.xlu0 0
        %1123 = vperm.xlu0 %1122, %v1109
        %v1124 = vpop.permute.xlu0 %1123
        %1127 = vset.pattern.permute.xlu0 0
        %1128 = vperm.xlu0 %1127, %v1110
        %v1129 = vpop.permute.xlu0 %1128
        %v1132 = vsel %vm540, %v1071, 0
        %v1135 = vsel %vm540, %v1072, 0
        %v1138 = vsel %vm540, %v1073, 0
        %v1141 = vsel %vm540, %v1074, 0
        %1143 = vmatprep.subr.mxu0 %v1076
        %1144 = vmatpush1.msra.mxu0 %v1075
        %1145 = vmatprep.subr.mxu0 %v1084
        %1146 = vmatpush1.msra.mxu0 %v1083
        %1147 = vmatprep.subr.mxu0 %v1092
        %1148 = vmatpush1.msra.mxu0 %v1091
        %1149 = vmatprep.subr.mxu0 %v1100
        %1150 = vmatpush1.msra.mxu0 %v1099
        %1151 = vmatprep.subr.mxu0 0.0
        %1152 = vmatpush1.msra.mxu0 0.0
        %1153 = vmatprep.subr.mxu0 0.0
        %1154 = vmatpush1.msra.mxu0 0.0
        %1155 = vmatprep.subr.mxu0 0.0
        %1156 = vmatpush1.msra.mxu0 0.0
        %1157 = vmatprep.subr.mxu0 0.0
        %1158 = vmatpush1.msra.mxu0 0.0
        %1159 = vmatprep.subr.mxu0 0.0
        %1160 = vmatpush1.msra.mxu0 0.0
        %1161 = vmatprep.subr.mxu0 0.0
        %1162 = vmatpush1.msra.mxu0 0.0
        %1163 = vmatprep.subr.mxu0 0.0
        %1164 = vmatpush1.msra.mxu0 0.0
        %1165 = vmatprep.subr.mxu0 0.0
        %1166 = vmatpush1.msra.mxu0 0.0
        %1167 = vmatprep.subr.mxu0 0.0
        %1168 = vmatpush1.msra.mxu0 0.0
        %1169 = vmatprep.subr.mxu0 0.0
        %1170 = vmatpush1.msra.mxu0 0.0
        %1171 = vmatprep.subr.mxu0 0.0
        %1172 = vmatpush1.msra.mxu0 0.0
        %1173 = vmatprep.subr.mxu0 0.0
        %1174 = vmatpush1.msra.mxu0 0.0
        %1175 = vmatprep.subr.mxu0 0.0
        %1176 = vmatpush1.msra.mxu0 0.0
        %1177 = vmatprep.subr.mxu0 0.0
        %1178 = vmatpush1.msra.mxu0 0.0
        %1179 = vmatprep.subr.mxu0 0.0
        %1180 = vmatpush1.msra.mxu0 0.0
        %1181 = vmatprep.subr.mxu0 0.0
        %1182 = vmatpush1.msra.mxu0 0.0
        %1183 = vmatprep.subr.mxu0 0.0
        %1184 = vmatpush1.msra.mxu0 0.0
        %1185 = vmatprep.subr.mxu0 0.0
        %1186 = vmatpush1.msra.mxu0 0.0
        %1187 = vmatprep.subr.mxu0 0.0
        %1188 = vmatpush1.msra.mxu0 0.0
        %1189 = vmatprep.subr.mxu0 0.0
        %1190 = vmatpush1.msra.mxu0 0.0
        %1191 = vmatprep.subr.mxu0 0.0
        %1192 = vmatpush1.msra.mxu0 0.0
        %1193 = vmatprep.subr.mxu0 0.0
        %1194 = vmatpush1.msra.mxu0 0.0
        %1195 = vmatprep.subr.mxu0 0.0
        %1196 = vmatpush1.msra.mxu0 0.0
        %1197 = vmatprep.subr.mxu0 0.0
        %1198 = vmatpush1.msra.mxu0 0.0
        %1199 = vmatprep.subr.mxu0 0.0
        %1200 = vmatpush1.msra.mxu0 0.0
        %1201 = vmatprep.subr.mxu0 0.0
        %1202 = vmatpush1.msra.mxu0 0.0
        %1203 = vmatprep.subr.mxu0 0.0
        %1204 = vmatpush1.msra.mxu0 0.0
        %1205 = vmatprep.subr.mxu0 0.0
        %1206 = vmatpush1.msra.mxu0 0.0
        %1207 = vmatprep.mubr.f32.mxu0 0.0
        %1208 = vmatmul.mubr.f32.gmra.mrb[0].mxu0 %v1132
        %v1209 = vpop.f32.mrb[0].mxu0
        %v1210 = vadd.f32 %v1114, %v1209
        %v1211 = vpop.f32.mrb[0].mxu0
        %v1212 = vadd.f32 %v1114, %v1211
        %1213 = vmatprep.mubr.f32.mxu0 0.0
        %1214 = vmatmul.mubr.f32.gmra.mrb[0].mxu0 %v1135
        %v1215 = vpop.f32.mrb[0].mxu0
        %v1216 = vadd.f32 %v1119, %v1215
        %v1217 = vpop.f32.mrb[0].mxu0
        %v1218 = vadd.f32 %v1119, %v1217
        %1219 = vmatprep.mubr.f32.mxu0 0.0
        %1220 = vmatmul.mubr.f32.gmra.mrb[0].mxu0 %v1138
        %v1221 = vpop.f32.mrb[0].mxu0
        %v1222 = vadd.f32 %v1124, %v1221
        %v1223 = vpop.f32.mrb[0].mxu0
        %v1224 = vadd.f32 %v1124, %v1223
        %1225 = vmatprep.mubr.f32.mxu0 0.0
        %1226 = vmatmul.mubr.f32.gmra.mrb[0].mxu0 %v1141
        %v1227 = vpop.f32.mrb[0].mxu0
        %v1228 = vadd.f32 %v1129, %v1227
        %v1229 = vpop.f32.mrb[0].mxu0
        %v1230 = vadd.f32 %v1129, %v1229
        %1231 = vdwg.mxu0
        %1232 = vmatprep.subr.mxu0 %v1078
        %1233 = vmatpush1.msra.mxu0 %v1077
        %1234 = vmatprep.subr.mxu0 %v1086
        %1235 = vmatpush1.msra.mxu0 %v1085
        %1236 = vmatprep.subr.mxu0 %v1094
        %1237 = vmatpush1.msra.mxu0 %v1093
        %1238 = vmatprep.subr.mxu0 %v1102
        %1239 = vmatpush1.msra.mxu0 %v1101
        %1240 = vmatprep.subr.mxu0 0.0
        %1241 = vmatpush1.msra.mxu0 0.0
        %1242 = vmatprep.subr.mxu0 0.0
        %1243 = vmatpush1.msra.mxu0 0.0
        %1244 = vmatprep.subr.mxu0 0.0
        %1245 = vmatpush1.msra.mxu0 0.0
        %1246 = vmatprep.subr.mxu0 0.0
        %1247 = vmatpush1.msra.mxu0 0.0
        %1248 = vmatprep.subr.mxu0 0.0
        %1249 = vmatpush1.msra.mxu0 0.0
        %1250 = vmatprep.subr.mxu0 0.0
        %1251 = vmatpush1.msra.mxu0 0.0
        %1252 = vmatprep.subr.mxu0 0.0
        %1253 = vmatpush1.msra.mxu0 0.0
        %1254 = vmatprep.subr.mxu0 0.0
        %1255 = vmatpush1.msra.mxu0 0.0
        %1256 = vmatprep.subr.mxu0 0.0
        %1257 = vmatpush1.msra.mxu0 0.0
        %1258 = vmatprep.subr.mxu0 0.0
        %1259 = vmatpush1.msra.mxu0 0.0
        %1260 = vmatprep.subr.mxu0 0.0
        %1261 = vmatpush1.msra.mxu0 0.0
        %1262 = vmatprep.subr.mxu0 0.0
        %1263 = vmatpush1.msra.mxu0 0.0
        %1264 = vmatprep.subr.mxu0 0.0
        %1265 = vmatpush1.msra.mxu0 0.0
        %1266 = vmatprep.subr.mxu0 0.0
        %1267 = vmatpush1.msra.mxu0 0.0
        %1268 = vmatprep.subr.mxu0 0.0
        %1269 = vmatpush1.msra.mxu0 0.0
        %1270 = vmatprep.subr.mxu0 0.0
        %1271 = vmatpush1.msra.mxu0 0.0
        %1272 = vmatprep.subr.mxu0 0.0
        %1273 = vmatpush1.msra.mxu0 0.0
        %1274 = vmatprep.subr.mxu0 0.0
        %1275 = vmatpush1.msra.mxu0 0.0
        %1276 = vmatprep.subr.mxu0 0.0
        %1277 = vmatpush1.msra.mxu0 0.0
        %1278 = vmatprep.subr.mxu0 0.0
        %1279 = vmatpush1.msra.mxu0 0.0
        %1280 = vmatprep.subr.mxu0 0.0
        %1281 = vmatpush1.msra.mxu0 0.0
        %1282 = vmatprep.subr.mxu0 0.0
        %1283 = vmatpush1.msra.mxu0 0.0
        %1284 = vmatprep.subr.mxu0 0.0
        %1285 = vmatpush1.msra.mxu0 0.0
        %1286 = vmatprep.subr.mxu0 0.0
        %1287 = vmatpush1.msra.mxu0 0.0
        %1288 = vmatprep.subr.mxu0 0.0
        %1289 = vmatpush1.msra.mxu0 0.0
        %1290 = vmatprep.subr.mxu0 0.0
        %1291 = vmatpush1.msra.mxu0 0.0
        %1292 = vmatprep.subr.mxu0 0.0
        %1293 = vmatpush1.msra.mxu0 0.0
        %1294 = vmatprep.subr.mxu0 0.0
        %1295 = vmatpush1.msra.mxu0 0.0
        %1296 = vmatprep.mubr.f32.mxu0 0.0
        %1297 = vmatmul.mubr.f32.gmra.mrb[0].mxu0 %v1132
        %v1298 = vpop.f32.mrb[0].mxu0
        %v1299 = vadd.f32 %v1114, %v1298
        %v1300 = vpop.f32.mrb[0].mxu0
        %v1301 = vadd.f32 %v1114, %v1300
        %1302 = vmatprep.mubr.f32.mxu0 0.0
        %1303 = vmatmul.mubr.f32.gmra.mrb[0].mxu0 %v1135
        %v1304 = vpop.f32.mrb[0].mxu0
        %v1305 = vadd.f32 %v1119, %v1304
        %v1306 = vpop.f32.mrb[0].mxu0
        %v1307 = vadd.f32 %v1119, %v1306
        %1308 = vmatprep.mubr.f32.mxu0 0.0
        %1309 = vmatmul.mubr.f32.gmra.mrb[0].mxu0 %v1138
        %v1310 = vpop.f32.mrb[0].mxu0
        %v1311 = vadd.f32 %v1124, %v1310
        %v1312 = vpop.f32.mrb[0].mxu0
        %v1313 = vadd.f32 %v1124, %v1312
        %1314 = vmatprep.mubr.f32.mxu0 0.0
        %1315 = vmatmul.mubr.f32.gmra.mrb[0].mxu0 %v1141
        %v1316 = vpop.f32.mrb[0].mxu0
        %v1317 = vadd.f32 %v1129, %v1316
        %v1318 = vpop.f32.mrb[0].mxu0
        %v1319 = vadd.f32 %v1129, %v1318
        %1320 = vdwg.mxu0
        %1321 = vmatprep.subr.mxu0 %v1080
        %1322 = vmatpush1.msra.mxu0 %v1079
        %1323 = vmatprep.subr.mxu0 %v1088
        %1324 = vmatpush1.msra.mxu0 %v1087
        %1325 = vmatprep.subr.mxu0 %v1096
        %1326 = vmatpush1.msra.mxu0 %v1095
        %1327 = vmatprep.subr.mxu0 %v1104
        %1328 = vmatpush1.msra.mxu0 %v1103
        %1329 = vmatprep.subr.mxu0 0.0
        %1330 = vmatpush1.msra.mxu0 0.0
        %1331 = vmatprep.subr.mxu0 0.0
        %1332 = vmatpush1.msra.mxu0 0.0
        %1333 = vmatprep.subr.mxu0 0.0
        %1334 = vmatpush1.msra.mxu0 0.0
        %1335 = vmatprep.subr.mxu0 0.0
        %1336 = vmatpush1.msra.mxu0 0.0
        %1337 = vmatprep.subr.mxu0 0.0
        %1338 = vmatpush1.msra.mxu0 0.0
        %1339 = vmatprep.subr.mxu0 0.0
        %1340 = vmatpush1.msra.mxu0 0.0
        %1341 = vmatprep.subr.mxu0 0.0
        %1342 = vmatpush1.msra.mxu0 0.0
        %1343 = vmatprep.subr.mxu0 0.0
        %1344 = vmatpush1.msra.mxu0 0.0
        %1345 = vmatprep.subr.mxu0 0.0
        %1346 = vmatpush1.msra.mxu0 0.0
        %1347 = vmatprep.subr.mxu0 0.0
        %1348 = vmatpush1.msra.mxu0 0.0
        %1349 = vmatprep.subr.mxu0 0.0
        %1350 = vmatpush1.msra.mxu0 0.0
        %1351 = vmatprep.subr.mxu0 0.0
        %1352 = vmatpush1.msra.mxu0 0.0
        %1353 = vmatprep.subr.mxu0 0.0
        %1354 = vmatpush1.msra.mxu0 0.0
        %1355 = vmatprep.subr.mxu0 0.0
        %1356 = vmatpush1.msra.mxu0 0.0
        %1357 = vmatprep.subr.mxu0 0.0
        %1358 = vmatpush1.msra.mxu0 0.0
        %1359 = vmatprep.subr.mxu0 0.0
        %1360 = vmatpush1.msra.mxu0 0.0
        %1361 = vmatprep.subr.mxu0 0.0
        %1362 = vmatpush1.msra.mxu0 0.0
        %1363 = vmatprep.subr.mxu0 0.0
        %1364 = vmatpush1.msra.mxu0 0.0
        %1365 = vmatprep.subr.mxu0 0.0
        %1366 = vmatpush1.msra.mxu0 0.0
        %1367 = vmatprep.subr.mxu0 0.0
        %1368 = vmatpush1.msra.mxu0 0.0
        %1369 = vmatprep.subr.mxu0 0.0
        %1370 = vmatpush1.msra.mxu0 0.0
        %1371 = vmatprep.subr.mxu0 0.0
        %1372 = vmatpush1.msra.mxu0 0.0
        %1373 = vmatprep.subr.mxu0 0.0
        %1374 = vmatpush1.msra.mxu0 0.0
        %1375 = vmatprep.subr.mxu0 0.0
        %1376 = vmatpush1.msra.mxu0 0.0
        %1377 = vmatprep.subr.mxu0 0.0
        %1378 = vmatpush1.msra.mxu0 0.0
        %1379 = vmatprep.subr.mxu0 0.0
        %1380 = vmatpush1.msra.mxu0 0.0
        %1381 = vmatprep.subr.mxu0 0.0
        %1382 = vmatpush1.msra.mxu0 0.0
        %1383 = vmatprep.subr.mxu0 0.0
        %1384 = vmatpush1.msra.mxu0 0.0
        %1385 = vmatprep.mubr.f32.mxu0 0.0
        %1386 = vmatmul.mubr.f32.gmra.mrb[0].mxu0 %v1132
        %v1387 = vpop.f32.mrb[0].mxu0
        %v1388 = vadd.f32 %v1114, %v1387
        %v1389 = vpop.f32.mrb[0].mxu0
        %v1390 = vadd.f32 %v1114, %v1389
        %1391 = vmatprep.mubr.f32.mxu0 0.0
        %1392 = vmatmul.mubr.f32.gmra.mrb[0].mxu0 %v1135
        %v1393 = vpop.f32.mrb[0].mxu0
        %v1394 = vadd.f32 %v1119, %v1393
        %v1395 = vpop.f32.mrb[0].mxu0
        %v1396 = vadd.f32 %v1119, %v1395
        %1397 = vmatprep.mubr.f32.mxu0 0.0
        %1398 = vmatmul.mubr.f32.gmra.mrb[0].mxu0 %v1138
        %v1399 = vpop.f32.mrb[0].mxu0
        %v1400 = vadd.f32 %v1124, %v1399
        %v1401 = vpop.f32.mrb[0].mxu0
        %v1402 = vadd.f32 %v1124, %v1401
        %1403 = vmatprep.mubr.f32.mxu0 0.0
        %1404 = vmatmul.mubr.f32.gmra.mrb[0].mxu0 %v1141
        %v1405 = vpop.f32.mrb[0].mxu0
        %v1406 = vadd.f32 %v1129, %v1405
        %v1407 = vpop.f32.mrb[0].mxu0
        %v1408 = vadd.f32 %v1129, %v1407
        %1409 = vdwg.mxu0
        %1410 = vmatprep.subr.mxu0 %v1082
        %1411 = vmatpush1.msra.mxu0 %v1081
        %1412 = vmatprep.subr.mxu0 %v1090
        %1413 = vmatpush1.msra.mxu0 %v1089
        %1414 = vmatprep.subr.mxu0 %v1098
        %1415 = vmatpush1.msra.mxu0 %v1097
        %1416 = vmatprep.subr.mxu0 %v1106
        %1417 = vmatpush1.msra.mxu0 %v1105
        %1418 = vmatprep.subr.mxu0 0.0
        %1419 = vmatpush1.msra.mxu0 0.0
        %1420 = vmatprep.subr.mxu0 0.0
        %1421 = vmatpush1.msra.mxu0 0.0
        %1422 = vmatprep.subr.mxu0 0.0
        %1423 = vmatpush1.msra.mxu0 0.0
        %1424 = vmatprep.subr.mxu0 0.0
        %1425 = vmatpush1.msra.mxu0 0.0
        %1426 = vmatprep.subr.mxu0 0.0
        %1427 = vmatpush1.msra.mxu0 0.0
        %1428 = vmatprep.subr.mxu0 0.0
        %1429 = vmatpush1.msra.mxu0 0.0
        %1430 = vmatprep.subr.mxu0 0.0
        %1431 = vmatpush1.msra.mxu0 0.0
        %1432 = vmatprep.subr.mxu0 0.0
        %1433 = vmatpush1.msra.mxu0 0.0
        %1434 = vmatprep.subr.mxu0 0.0
        %1435 = vmatpush1.msra.mxu0 0.0
        %1436 = vmatprep.subr.mxu0 0.0
        %1437 = vmatpush1.msra.mxu0 0.0
        %1438 = vmatprep.subr.mxu0 0.0
        %1439 = vmatpush1.msra.mxu0 0.0
        %1440 = vmatprep.subr.mxu0 0.0
        %1441 = vmatpush1.msra.mxu0 0.0
        %1442 = vmatprep.subr.mxu0 0.0
        %1443 = vmatpush1.msra.mxu0 0.0
        %1444 = vmatprep.subr.mxu0 0.0
        %1445 = vmatpush1.msra.mxu0 0.0
        %1446 = vmatprep.subr.mxu0 0.0
        %1447 = vmatpush1.msra.mxu0 0.0
        %1448 = vmatprep.subr.mxu0 0.0
        %1449 = vmatpush1.msra.mxu0 0.0
        %1450 = vmatprep.subr.mxu0 0.0
        %1451 = vmatpush1.msra.mxu0 0.0
        %1452 = vmatprep.subr.mxu0 0.0
        %1453 = vmatpush1.msra.mxu0 0.0
        %1454 = vmatprep.subr.mxu0 0.0
        %1455 = vmatpush1.msra.mxu0 0.0
        %1456 = vmatprep.subr.mxu0 0.0
        %1457 = vmatpush1.msra.mxu0 0.0
        %1458 = vmatprep.subr.mxu0 0.0
        %1459 = vmatpush1.msra.mxu0 0.0
        %1460 = vmatprep.subr.mxu0 0.0
        %1461 = vmatpush1.msra.mxu0 0.0
        %1462 = vmatprep.subr.mxu0 0.0
        %1463 = vmatpush1.msra.mxu0 0.0
        %1464 = vmatprep.subr.mxu0 0.0
        %1465 = vmatpush1.msra.mxu0 0.0
        %1466 = vmatprep.subr.mxu0 0.0
        %1467 = vmatpush1.msra.mxu0 0.0
        %1468 = vmatprep.subr.mxu0 0.0
        %1469 = vmatpush1.msra.mxu0 0.0
        %1470 = vmatprep.subr.mxu0 0.0
        %1471 = vmatpush1.msra.mxu0 0.0
        %1472 = vmatprep.subr.mxu0 0.0
        %1473 = vmatpush1.msra.mxu0 0.0
        %1474 = vmatprep.mubr.f32.mxu0 0.0
        %1475 = vmatmul.mubr.f32.gmra.mrb[0].mxu0 %v1132
        %v1476 = vpop.f32.mrb[0].mxu0
        %v1477 = vadd.f32 %v1114, %v1476
        %v1478 = vpop.f32.mrb[0].mxu0
        %v1479 = vadd.f32 %v1114, %v1478
        %1480 = vmatprep.mubr.f32.mxu0 0.0
        %1481 = vmatmul.mubr.f32.gmra.mrb[0].mxu0 %v1135
        %v1482 = vpop.f32.mrb[0].mxu0
        %v1483 = vadd.f32 %v1119, %v1482
        %v1484 = vpop.f32.mrb[0].mxu0
        %v1485 = vadd.f32 %v1119, %v1484
        %1486 = vmatprep.mubr.f32.mxu0 0.0
        %1487 = vmatmul.mubr.f32.gmra.mrb[0].mxu0 %v1138
        %v1488 = vpop.f32.mrb[0].mxu0
        %v1489 = vadd.f32 %v1124, %v1488
        %v1490 = vpop.f32.mrb[0].mxu0
        %v1491 = vadd.f32 %v1124, %v1490
        %1492 = vmatprep.mubr.f32.mxu0 0.0
        %1493 = vmatmul.mubr.f32.gmra.mrb[0].mxu0 %v1141
        %v1494 = vpop.f32.mrb[0].mxu0
        %v1495 = vadd.f32 %v1129, %v1494
        %v1496 = vpop.f32.mrb[0].mxu0
        %v1497 = vadd.f32 %v1129, %v1496
        %1498 = vdwg.mxu0
        %v1500 = vsel %vm540, %v611, 0
        %1502 = vmatprep.subr.mxu0 %v1212
        %1503 = vmatpush1.msra.mxu0 %v1210
        %1504 = vmatprep.subr.mxu0 %v1218
        %1505 = vmatpush1.msra.mxu0 %v1216
        %1506 = vmatprep.subr.mxu0 %v1224
        %1507 = vmatpush1.msra.mxu0 %v1222
        %1508 = vmatprep.subr.mxu0 %v1230
        %1509 = vmatpush1.msra.mxu0 %v1228
        %1510 = vmatprep.subr.mxu0 0.0
        %1511 = vmatpush1.msra.mxu0 0.0
        %1512 = vmatprep.subr.mxu0 0.0
        %1513 = vmatpush1.msra.mxu0 0.0
        %1514 = vmatprep.subr.mxu0 0.0
        %1515 = vmatpush1.msra.mxu0 0.0
        %1516 = vmatprep.subr.mxu0 0.0
        %1517 = vmatpush1.msra.mxu0 0.0
        %1518 = vmatprep.subr.mxu0 0.0
        %1519 = vmatpush1.msra.mxu0 0.0
        %1520 = vmatprep.subr.mxu0 0.0
        %1521 = vmatpush1.msra.mxu0 0.0
        %1522 = vmatprep.subr.mxu0 0.0
        %1523 = vmatpush1.msra.mxu0 0.0
        %1524 = vmatprep.subr.mxu0 0.0
        %1525 = vmatpush1.msra.mxu0 0.0
        %1526 = vmatprep.subr.mxu0 0.0
        %1527 = vmatpush1.msra.mxu0 0.0
        %1528 = vmatprep.subr.mxu0 0.0
        %1529 = vmatpush1.msra.mxu0 0.0
        %1530 = vmatprep.subr.mxu0 0.0
        %1531 = vmatpush1.msra.mxu0 0.0
        %1532 = vmatprep.subr.mxu0 0.0
        %1533 = vmatpush1.msra.mxu0 0.0
        %1534 = vmatprep.subr.mxu0 0.0
        %1535 = vmatpush1.msra.mxu0 0.0
        %1536 = vmatprep.subr.mxu0 0.0
        %1537 = vmatpush1.msra.mxu0 0.0
        %1538 = vmatprep.subr.mxu0 0.0
        %1539 = vmatpush1.msra.mxu0 0.0
        %1540 = vmatprep.subr.mxu0 0.0
        %1541 = vmatpush1.msra.mxu0 0.0
        %1542 = vmatprep.subr.mxu0 0.0
        %1543 = vmatpush1.msra.mxu0 0.0
        %1544 = vmatprep.subr.mxu0 0.0
        %1545 = vmatpush1.msra.mxu0 0.0
        %1546 = vmatprep.subr.mxu0 0.0
        %1547 = vmatpush1.msra.mxu0 0.0
        %1548 = vmatprep.subr.mxu0 0.0
        %1549 = vmatpush1.msra.mxu0 0.0
        %1550 = vmatprep.subr.mxu0 0.0
        %1551 = vmatpush1.msra.mxu0 0.0
        %1552 = vmatprep.subr.mxu0 0.0
        %1553 = vmatpush1.msra.mxu0 0.0
        %1554 = vmatprep.subr.mxu0 0.0
        %1555 = vmatpush1.msra.mxu0 0.0
        %1556 = vmatprep.subr.mxu0 0.0
        %1557 = vmatpush1.msra.mxu0 0.0
        %1558 = vmatprep.subr.mxu0 0.0
        %1559 = vmatpush1.msra.mxu0 0.0
        %1560 = vmatprep.subr.mxu0 0.0
        %1561 = vmatpush1.msra.mxu0 0.0
        %1562 = vmatprep.subr.mxu0 0.0
        %1563 = vmatpush1.msra.mxu0 0.0
        %1564 = vmatprep.subr.mxu0 0.0
        %1565 = vmatpush1.msra.mxu0 0.0
        %1566 = vmatprep.mubr.f32.mxu0 0.0
        %1567 = vmatmul.mubr.f32.gmra.mrb[0].mxu0 %v1500
        %v1568 = vpop.f32.mrb[0].mxu0
        %v1569 = vadd.f32 0.0, %v1568
        %v1570 = vpop.f32.mrb[0].mxu0
        %v1571 = vadd.f32 0.0, %v1570
        %1572 = vdwg.mxu0
        %1573 = vmatprep.subr.mxu0 %v1301
        %1574 = vmatpush1.msra.mxu0 %v1299
        %1575 = vmatprep.subr.mxu0 %v1307
        %1576 = vmatpush1.msra.mxu0 %v1305
        %1577 = vmatprep.subr.mxu0 %v1313
        %1578 = vmatpush1.msra.mxu0 %v1311
        %1579 = vmatprep.subr.mxu0 %v1319
        %1580 = vmatpush1.msra.mxu0 %v1317
        %1581 = vmatprep.subr.mxu0 0.0
        %1582 = vmatpush1.msra.mxu0 0.0
        %1583 = vmatprep.subr.mxu0 0.0
        %1584 = vmatpush1.msra.mxu0 0.0
        %1585 = vmatprep.subr.mxu0 0.0
        %1586 = vmatpush1.msra.mxu0 0.0
        %1587 = vmatprep.subr.mxu0 0.0
        %1588 = vmatpush1.msra.mxu0 0.0
        %1589 = vmatprep.subr.mxu0 0.0
        %1590 = vmatpush1.msra.mxu0 0.0
        %1591 = vmatprep.subr.mxu0 0.0
        %1592 = vmatpush1.msra.mxu0 0.0
        %1593 = vmatprep.subr.mxu0 0.0
        %1594 = vmatpush1.msra.mxu0 0.0
        %1595 = vmatprep.subr.mxu0 0.0
        %1596 = vmatpush1.msra.mxu0 0.0
        %1597 = vmatprep.subr.mxu0 0.0
        %1598 = vmatpush1.msra.mxu0 0.0
        %1599 = vmatprep.subr.mxu0 0.0
        %1600 = vmatpush1.msra.mxu0 0.0
        %1601 = vmatprep.subr.mxu0 0.0
        %1602 = vmatpush1.msra.mxu0 0.0
        %1603 = vmatprep.subr.mxu0 0.0
        %1604 = vmatpush1.msra.mxu0 0.0
        %1605 = vmatprep.subr.mxu0 0.0
        %1606 = vmatpush1.msra.mxu0 0.0
        %1607 = vmatprep.subr.mxu0 0.0
        %1608 = vmatpush1.msra.mxu0 0.0
        %1609 = vmatprep.subr.mxu0 0.0
        %1610 = vmatpush1.msra.mxu0 0.0
        %1611 = vmatprep.subr.mxu0 0.0
        %1612 = vmatpush1.msra.mxu0 0.0
        %1613 = vmatprep.subr.mxu0 0.0
        %1614 = vmatpush1.msra.mxu0 0.0
        %1615 = vmatprep.subr.mxu0 0.0
        %1616 = vmatpush1.msra.mxu0 0.0
        %1617 = vmatprep.subr.mxu0 0.0
        %1618 = vmatpush1.msra.mxu0 0.0
        %1619 = vmatprep.subr.mxu0 0.0
        %1620 = vmatpush1.msra.mxu0 0.0
        %1621 = vmatprep.subr.mxu0 0.0
        %1622 = vmatpush1.msra.mxu0 0.0
        %1623 = vmatprep.subr.mxu0 0.0
        %1624 = vmatpush1.msra.mxu0 0.0
        %1625 = vmatprep.subr.mxu0 0.0
        %1626 = vmatpush1.msra.mxu0 0.0
        %1627 = vmatprep.subr.mxu0 0.0
        %1628 = vmatpush1.msra.mxu0 0.0
        %1629 = vmatprep.subr.mxu0 0.0
        %1630 = vmatpush1.msra.mxu0 0.0
        %1631 = vmatprep.subr.mxu0 0.0
        %1632 = vmatpush1.msra.mxu0 0.0
        %1633 = vmatprep.subr.mxu0 0.0
        %1634 = vmatpush1.msra.mxu0 0.0
        %1635 = vmatprep.subr.mxu0 0.0
        %1636 = vmatpush1.msra.mxu0 0.0
        %1637 = vmatprep.mubr.f32.mxu0 0.0
        %1638 = vmatmul.mubr.f32.gmra.mrb[0].mxu0 %v1500
        %v1639 = vpop.f32.mrb[0].mxu0
        %v1640 = vadd.f32 0.0, %v1639
        %v1641 = vpop.f32.mrb[0].mxu0
        %v1642 = vadd.f32 0.0, %v1641
        %1643 = vdwg.mxu0
        %1644 = vmatprep.subr.mxu0 %v1390
        %1645 = vmatpush1.msra.mxu0 %v1388
        %1646 = vmatprep.subr.mxu0 %v1396
        %1647 = vmatpush1.msra.mxu0 %v1394
        %1648 = vmatprep.subr.mxu0 %v1402
        %1649 = vmatpush1.msra.mxu0 %v1400
        %1650 = vmatprep.subr.mxu0 %v1408
        %1651 = vmatpush1.msra.mxu0 %v1406
        %1652 = vmatprep.subr.mxu0 0.0
        %1653 = vmatpush1.msra.mxu0 0.0
        %1654 = vmatprep.subr.mxu0 0.0
        %1655 = vmatpush1.msra.mxu0 0.0
        %1656 = vmatprep.subr.mxu0 0.0
        %1657 = vmatpush1.msra.mxu0 0.0
        %1658 = vmatprep.subr.mxu0 0.0
        %1659 = vmatpush1.msra.mxu0 0.0
        %1660 = vmatprep.subr.mxu0 0.0
        %1661 = vmatpush1.msra.mxu0 0.0
        %1662 = vmatprep.subr.mxu0 0.0
        %1663 = vmatpush1.msra.mxu0 0.0
        %1664 = vmatprep.subr.mxu0 0.0
        %1665 = vmatpush1.msra.mxu0 0.0
        %1666 = vmatprep.subr.mxu0 0.0
        %1667 = vmatpush1.msra.mxu0 0.0
        %1668 = vmatprep.subr.mxu0 0.0
        %1669 = vmatpush1.msra.mxu0 0.0
        %1670 = vmatprep.subr.mxu0 0.0
        %1671 = vmatpush1.msra.mxu0 0.0
        %1672 = vmatprep.subr.mxu0 0.0
        %1673 = vmatpush1.msra.mxu0 0.0
        %1674 = vmatprep.subr.mxu0 0.0
        %1675 = vmatpush1.msra.mxu0 0.0
        %1676 = vmatprep.subr.mxu0 0.0
        %1677 = vmatpush1.msra.mxu0 0.0
        %1678 = vmatprep.subr.mxu0 0.0
        %1679 = vmatpush1.msra.mxu0 0.0
        %1680 = vmatprep.subr.mxu0 0.0
        %1681 = vmatpush1.msra.mxu0 0.0
        %1682 = vmatprep.subr.mxu0 0.0
        %1683 = vmatpush1.msra.mxu0 0.0
        %1684 = vmatprep.subr.mxu0 0.0
        %1685 = vmatpush1.msra.mxu0 0.0
        %1686 = vmatprep.subr.mxu0 0.0
        %1687 = vmatpush1.msra.mxu0 0.0
        %1688 = vmatprep.subr.mxu0 0.0
        %1689 = vmatpush1.msra.mxu0 0.0
        %1690 = vmatprep.subr.mxu0 0.0
        %1691 = vmatpush1.msra.mxu0 0.0
        %1692 = vmatprep.subr.mxu0 0.0
        %1693 = vmatpush1.msra.mxu0 0.0
        %1694 = vmatprep.subr.mxu0 0.0
        %1695 = vmatpush1.msra.mxu0 0.0
        %1696 = vmatprep.subr.mxu0 0.0
        %1697 = vmatpush1.msra.mxu0 0.0
        %1698 = vmatprep.subr.mxu0 0.0
        %1699 = vmatpush1.msra.mxu0 0.0
        %1700 = vmatprep.subr.mxu0 0.0
        %1701 = vmatpush1.msra.mxu0 0.0
        %1702 = vmatprep.subr.mxu0 0.0
        %1703 = vmatpush1.msra.mxu0 0.0
        %1704 = vmatprep.subr.mxu0 0.0
        %1705 = vmatpush1.msra.mxu0 0.0
        %1706 = vmatprep.subr.mxu0 0.0
        %1707 = vmatpush1.msra.mxu0 0.0
        %1708 = vmatprep.mubr.f32.mxu0 0.0
        %1709 = vmatmul.mubr.f32.gmra.mrb[0].mxu0 %v1500
        %v1710 = vpop.f32.mrb[0].mxu0
        %v1711 = vadd.f32 0.0, %v1710
        %v1712 = vpop.f32.mrb[0].mxu0
        %v1713 = vadd.f32 0.0, %v1712
        %1714 = vdwg.mxu0
        %1715 = vmatprep.subr.mxu0 %v1479
        %1716 = vmatpush1.msra.mxu0 %v1477
        %1717 = vmatprep.subr.mxu0 %v1485
        %1718 = vmatpush1.msra.mxu0 %v1483
        %1719 = vmatprep.subr.mxu0 %v1491
        %1720 = vmatpush1.msra.mxu0 %v1489
        %1721 = vmatprep.subr.mxu0 %v1497
        %1722 = vmatpush1.msra.mxu0 %v1495
        %1723 = vmatprep.subr.mxu0 0.0
        %1724 = vmatpush1.msra.mxu0 0.0
        %1725 = vmatprep.subr.mxu0 0.0
        %1726 = vmatpush1.msra.mxu0 0.0
        %1727 = vmatprep.subr.mxu0 0.0
        %1728 = vmatpush1.msra.mxu0 0.0
        %1729 = vmatprep.subr.mxu0 0.0
        %1730 = vmatpush1.msra.mxu0 0.0
        %1731 = vmatprep.subr.mxu0 0.0
        %1732 = vmatpush1.msra.mxu0 0.0
        %1733 = vmatprep.subr.mxu0 0.0
        %1734 = vmatpush1.msra.mxu0 0.0
        %1735 = vmatprep.subr.mxu0 0.0
        %1736 = vmatpush1.msra.mxu0 0.0
        %1737 = vmatprep.subr.mxu0 0.0
        %1738 = vmatpush1.msra.mxu0 0.0
        %1739 = vmatprep.subr.mxu0 0.0
        %1740 = vmatpush1.msra.mxu0 0.0
        %1741 = vmatprep.subr.mxu0 0.0
        %1742 = vmatpush1.msra.mxu0 0.0
        %1743 = vmatprep.subr.mxu0 0.0
        %1744 = vmatpush1.msra.mxu0 0.0
        %1745 = vmatprep.subr.mxu0 0.0
        %1746 = vmatpush1.msra.mxu0 0.0
        %1747 = vmatprep.subr.mxu0 0.0
        %1748 = vmatpush1.msra.mxu0 0.0
        %1749 = vmatprep.subr.mxu0 0.0
        %1750 = vmatpush1.msra.mxu0 0.0
        %1751 = vmatprep.subr.mxu0 0.0
        %1752 = vmatpush1.msra.mxu0 0.0
        %1753 = vmatprep.subr.mxu0 0.0
        %1754 = vmatpush1.msra.mxu0 0.0
        %1755 = vmatprep.subr.mxu0 0.0
        %1756 = vmatpush1.msra.mxu0 0.0
        %1757 = vmatprep.subr.mxu0 0.0
        %1758 = vmatpush1.msra.mxu0 0.0
        %1759 = vmatprep.subr.mxu0 0.0
        %1760 = vmatpush1.msra.mxu0 0.0
        %1761 = vmatprep.subr.mxu0 0.0
        %1762 = vmatpush1.msra.mxu0 0.0
        %1763 = vmatprep.subr.mxu0 0.0
        %1764 = vmatpush1.msra.mxu0 0.0
        %1765 = vmatprep.subr.mxu0 0.0
        %1766 = vmatpush1.msra.mxu0 0.0
        %1767 = vmatprep.subr.mxu0 0.0
        %1768 = vmatpush1.msra.mxu0 0.0
        %1769 = vmatprep.subr.mxu0 0.0
        %1770 = vmatpush1.msra.mxu0 0.0
        %1771 = vmatprep.subr.mxu0 0.0
        %1772 = vmatpush1.msra.mxu0 0.0
        %1773 = vmatprep.subr.mxu0 0.0
        %1774 = vmatpush1.msra.mxu0 0.0
        %1775 = vmatprep.subr.mxu0 0.0
        %1776 = vmatpush1.msra.mxu0 0.0
        %1777 = vmatprep.subr.mxu0 0.0
        %1778 = vmatpush1.msra.mxu0 0.0
        %1779 = vmatprep.mubr.f32.mxu0 0.0
        %1780 = vmatmul.mubr.f32.gmra.mrb[0].mxu0 %v1500
        %v1781 = vpop.f32.mrb[0].mxu0
        %v1782 = vadd.f32 0.0, %v1781
        %v1783 = vpop.f32.mrb[0].mxu0
        %v1784 = vadd.f32 0.0, %v1783
        %1785 = vdwg.mxu0
        %v1786 = vlaneseq
        %v1787 = vand.u32 %v1786, 127
        %s1788 = sld [smem:[#allocation4 + %s286]]
        %v1789 = vstv %s1788
        %vm1790 = vcmp.lt.s32.totalorder %v1787, %v1789
        %v1791 = vsel %vm1790, %v1569, -1e+30
        %s1792 = sld [smem:[#allocation4 + %s317]]
        %v1793 = vstv %s1792
        %vm1794 = vcmp.lt.s32.totalorder %v1787, %v1793
        %v1795 = vsel %vm1794, %v1571, -1e+30
        %s1796 = sld [smem:[#allocation4 + %s347]]
        %v1797 = vstv %s1796
        %vm1798 = vcmp.lt.s32.totalorder %v1787, %v1797
        %v1799 = vsel %vm1798, %v1640, -1e+30
        %s1800 = sld [smem:[#allocation4 + %s377]]
        %v1801 = vstv %s1800
        %vm1802 = vcmp.lt.s32.totalorder %v1787, %v1801
        %v1803 = vsel %vm1802, %v1642, -1e+30
        %s1804 = sld [smem:[#allocation4 + %s407]]
        %v1805 = vstv %s1804
        %vm1806 = vcmp.lt.s32.totalorder %v1787, %v1805
        %v1807 = vsel %vm1806, %v1711, -1e+30
        %s1808 = sld [smem:[#allocation4 + %s437]]
        %v1809 = vstv %s1808
        %vm1810 = vcmp.lt.s32.totalorder %v1787, %v1809
        %v1811 = vsel %vm1810, %v1713, -1e+30
        %s1812 = sld [smem:[#allocation4 + %s467]]
        %v1813 = vstv %s1812
        %vm1814 = vcmp.lt.s32.totalorder %v1787, %v1813
        %v1815 = vsel %vm1814, %v1782, -1e+30
        %s1816 = sld [smem:[#allocation4 + %s497]]
        %v1817 = vstv %s1816
        %vm1818 = vcmp.lt.s32.totalorder %v1787, %v1817
        %v1819 = vsel %vm1818, %v1784, -1e+30
        %vm1820 = vcmask 1040384
        %v1821 = vsel %vm1820, %v1791, %v1795
        %vm1822 = vcmask 1041408
        %v1823 = vsel %vm1822, %v1821, %v1799
        %vm1824 = vcmask 1042432
        %v1825 = vsel %vm1824, %v1823, %v1803
        %vm1826 = vcmask 1043456
        %v1827 = vsel %vm1826, %v1825, %v1807
        %vm1828 = vcmask 1044480
        %v1829 = vsel %vm1828, %v1827, %v1811
        %vm1830 = vcmask 1045504
        %v1831 = vsel %vm1830, %v1829, %v1815
        %vm1832 = vcmask 1046528
        %v1833 = vsel %vm1832, %v1831, %v1819
        %1834 = vmax.xlane.f32.xlu0 %v1833
        %v1835 = vpop.xlane.xlu0 %1834
        %v1836 = vsub.f32 %v1833, %v1835
        %v1837 = vmul.f32 %v1836, 1.442695
        %v1838 = vpow.pop %v1837
        %1839 = vadd.xlane.f32.xlu0 %v1838
        %v1840 = vpop.xlane.xlu0 %1839
        %v1841 = vrcp.pop %v1840
        %v1842 = vmul.f32 %v1838, %v1841
        %1843 = vst [vmem:[%s281] sm:$0xff] %v1842
        %s1844 = sand.u32 %s193, 1
        %s1845 = scalar_lea.sflag [#allocation7], %s1844
        %s1846 = sand.u32 %s193, 1
        %s1847 = smul.addr %s1846, 8
        %s1848 = scalar_lea.vmem [#allocation6], %s1847
        // Predicated region
        $region49: #{policy_forward_batch.1} parent=47 // pred_check
          %p1849 = pneg %p203
        $region50: #{policy_forward_batch.1} parent=47 // pred_check_branch
          %1851 = sbr.rel (%p1849) target = $region52
        $region51: #{policy_forward_batch.1} parent=47 // pred_region
          %s1853 = ssub.s32 128, 128
          %1854 = vsyncadd %s1845, %s1853
          %s1855 = smul.addr %s33, 128
          %s1856 = scalar_lea.hbm %s9, %s1855
          %s1858 = sshll.u32 %s1848, 4
          %s1859 = int_to_ptr.vmem [resolvable:$true] %s1858
          %1861 = dma.vmem_to_hbm [thread:$0]  %s1859, 128, %s1856, %s1845
        $region52: #{policy_forward_batch.1} parent=47 // pred_fallthru
          _
      $region48: #{policy_forward_batch.1} parent=5 // pred_fallthru
        _
      %p1862 = scmp.le.s32.totalorder 2, %s28
      // Predicated region
      $region53: #{policy_forward_batch.1} parent=5 // pred_check
        %p1863 = pneg %p1862
      $region54: #{policy_forward_batch.1} parent=5 // pred_check_branch
        %1865 = sbr.rel (%p1863) target = $region56
      $region55: #{policy_forward_batch.1} parent=5 // pred_region
        %s1866 = ssub.s32 %s28, 2
        // Predicated region
        $region57: #{policy_forward_batch.1} parent=55 // pred_check
          %p1867 = pneg %p209
        $region58: #{policy_forward_batch.1} parent=55 // pred_check_branch
          %1869 = sbr.rel (%p1867) target = $region60
        $region59: #{policy_forward_batch.1} parent=55 // pred_region
          %s1870 = sand.u32 %s194, 1
          %s1871 = scalar_lea.sflag [#allocation7], %s1870
          %s1872 = sand.u32 %s194, 1
          %s1873 = smul.addr %s1872, 8
          %s1874 = scalar_lea.vmem [#allocation6], %s1873
          %1875 = dma.done %s1871, 128
        $region60: #{policy_forward_batch.1} parent=55 // pred_fallthru
          _
      $region56: #{policy_forward_batch.1} parent=5 // pred_fallthru
        _
    $region6: #{policy_forward_batch.1} parent=1 // loop_footer
      %s32 = sadd.s32 1, %s28
    $region7: #{policy_forward_batch.1} parent=1 // loop_footer_branch
      %27 = sbr.rel target = $region3
    $region8: #{policy_forward_batch.1} parent=1 // loop_exit
      _
    %1876 = vsyncpa [#allocation7], 1
    %s1877 = scalar_lea.sflag [#allocation7], 1
    %1878 = vsyncpa %s1877, 1

</llo_original>
